<compile_context>
chip_gen: v7x
topology: tpu7x:2x2x1
jax: 0.10.0
libtpu: 0.0.40
codegen_flags: <defaults>
</compile_context>

<pallas_src>
import jax
import jax.numpy as jnp
from jax.experimental import pallas as pl
from jax.experimental.pallas import tpu as pltpu


def _round_up(x, m):
    return ((x + m - 1) // m) * m


# ---------------------------------------------------------------------------
# Small path: one grid step, static loop over output channels inside kernel.
# ---------------------------------------------------------------------------

def _gt_first_small_kernel(w1_ref, w2_ref, a_ref, h_ref):
    """H[o] = (sum_c sw1[o,c] A[c]) @ (sum_c sw2[o,c] A[c]) for all o."""
    c_out = h_ref.shape[0]
    c_in = a_ref.shape[0]
    for o in range(c_out):                       # static, tiny C_out
        lhs = w1_ref[o, 0] * a_ref[0]
        rhs = w2_ref[o, 0] * a_ref[0]
        for c in range(1, c_in):                 # static, tiny C_in
            ac = a_ref[c]
            lhs = lhs + w1_ref[o, c] * ac
            rhs = rhs + w2_ref[o, c] * ac
        h_ref[o] = jnp.dot(
            lhs.astype(jnp.bfloat16), rhs.astype(jnp.bfloat16),
            preferred_element_type=jnp.float32).astype(h_ref.dtype)


def _gt_notfirst_small_kernel(w1_ref, hprev_ref, a_ref, h_ref):
    """H[o] = H_prev[o] @ (sum_c sw1[o,c] A[c]) for all o."""
    c_out = h_ref.shape[0]
    c_in = a_ref.shape[0]
    for o in range(c_out):
        rhs = w1_ref[o, 0] * a_ref[0]
        for c in range(1, c_in):
            rhs = rhs + w1_ref[o, c] * a_ref[c]
        h_ref[o] = jnp.dot(
            hprev_ref[o].astype(jnp.bfloat16), rhs.astype(jnp.bfloat16),
            preferred_element_type=jnp.float32).astype(h_ref.dtype)


def _small_call_first(sw1, sw2, A_pad):
    C_in, N_pad, _ = A_pad.shape
    C_out = sw1.shape[0]
    return pl.pallas_call(
        _gt_first_small_kernel,
        out_shape=jax.ShapeDtypeStruct((C_out, N_pad, N_pad), A_pad.dtype),
        grid_spec=pltpu.PrefetchScalarGridSpec(
            num_scalar_prefetch=0,
            grid=(1,),
            in_specs=[
                pl.BlockSpec(memory_space=pltpu.MemorySpace.SMEM),
                pl.BlockSpec(memory_space=pltpu.MemorySpace.SMEM),
                pl.BlockSpec((C_in, N_pad, N_pad), lambda o: (0, 0, 0)),
            ],
            out_specs=pl.BlockSpec((C_out, N_pad, N_pad), lambda o: (0, 0, 0)),
        ),
        compiler_params=pltpu.CompilerParams(
            dimension_semantics=("arbitrary",)),
    )(sw1, sw2, A_pad)


def _small_call_notfirst(sw1, H_prev_pad, A_pad):
    C_in, N_pad, _ = A_pad.shape
    C_out = sw1.shape[0]
    return pl.pallas_call(
        _gt_notfirst_small_kernel,
        out_shape=jax.ShapeDtypeStruct((C_out, N_pad, N_pad), A_pad.dtype),
        grid_spec=pltpu.PrefetchScalarGridSpec(
            num_scalar_prefetch=0,
            grid=(1,),
            in_specs=[
                pl.BlockSpec(memory_space=pltpu.MemorySpace.SMEM),
                pl.BlockSpec((C_out, N_pad, N_pad), lambda o: (0, 0, 0)),
                pl.BlockSpec((C_in, N_pad, N_pad), lambda o: (0, 0, 0)),
            ],
            out_specs=pl.BlockSpec((C_out, N_pad, N_pad), lambda o: (0, 0, 0)),
        ),
        compiler_params=pltpu.CompilerParams(
            dimension_semantics=("arbitrary",)),
    )(sw1, H_prev_pad, A_pad)


# ---------------------------------------------------------------------------
# Tiled path: grid (C_out, M/t, N/t, K/t), f32 accumulator, bf16 MXU operands.
# ---------------------------------------------------------------------------

def _gt_first_tiled_kernel(w1_ref, w2_ref, al_ref, ar_ref, h_ref, acc_ref):
    o = pl.program_id(0)
    k = pl.program_id(3)
    c_in = al_ref.shape[0]

    @pl.when(k == 0)
    def _():
        acc_ref[...] = jnp.zeros_like(acc_ref)

    # Per-tile channel mix on the VPU (never materializes full (N,N) mixes).
    lhs = w1_ref[o, 0] * al_ref[0]
    rhs = w2_ref[o, 0] * ar_ref[0]
    for c in range(1, c_in):
        lhs = lhs + w1_ref[o, c] * al_ref[c]
        rhs = rhs + w2_ref[o, c] * ar_ref[c]

    acc_ref[...] += jnp.dot(
        lhs.astype(jnp.bfloat16), rhs.astype(jnp.bfloat16),
        preferred_element_type=jnp.float32)

    @pl.when(k == pl.num_programs(3) - 1)
    def _():
        h_ref[0] = acc_ref[...].astype(h_ref.dtype)


def _gt_notfirst_tiled_kernel(w1_ref, hp_ref, ar_ref, h_ref, acc_ref):
    o = pl.program_id(0)
    k = pl.program_id(3)
    c_in = ar_ref.shape[0]

    @pl.when(k == 0)
    def _():
        acc_ref[...] = jnp.zeros_like(acc_ref)

    rhs = w1_ref[o, 0] * ar_ref[0]
    for c in range(1, c_in):
        rhs = rhs + w1_ref[o, c] * ar_ref[c]

    acc_ref[...] += jnp.dot(
        hp_ref[0].astype(jnp.bfloat16), rhs.astype(jnp.bfloat16),
        preferred_element_type=jnp.float32)

    @pl.when(k == pl.num_programs(3) - 1)
    def _():
        h_ref[0] = acc_ref[...].astype(h_ref.dtype)


def _tiled_call_first(sw1, sw2, A_pad, tile):
    C_in, N_pad, _ = A_pad.shape
    C_out = sw1.shape[0]
    nt = N_pad // tile
    return pl.pallas_call(
        _gt_first_tiled_kernel,
        out_shape=jax.ShapeDtypeStruct((C_out, N_pad, N_pad), A_pad.dtype),
        grid_spec=pltpu.PrefetchScalarGridSpec(
            num_scalar_prefetch=0,
            grid=(C_out, nt, nt, nt),
            in_specs=[
                pl.BlockSpec(memory_space=pltpu.MemorySpace.SMEM),
                pl.BlockSpec(memory_space=pltpu.MemorySpace.SMEM),
                # A, lhs view: (c, i, k) tiles
                pl.BlockSpec((C_in, tile, tile), lambda o, i, j, k: (0, i, k)),
                # A, rhs view: (c, k, j) tiles
                pl.BlockSpec((C_in, tile, tile), lambda o, i, j, k: (0, k, j)),
            ],
            out_specs=pl.BlockSpec((1, tile, tile), lambda o, i, j, k: (o, i, j)),
            scratch_shapes=[pltpu.VMEM((tile, tile), jnp.float32)],
        ),
        compiler_params=pltpu.CompilerParams(
            dimension_semantics=("parallel", "parallel", "parallel", "arbitrary")),
    )(sw1, sw2, A_pad, A_pad)


def _tiled_call_notfirst(sw1, H_prev_pad, A_pad, tile):
    C_in, N_pad, _ = A_pad.shape
    C_out = sw1.shape[0]
    nt = N_pad // tile
    return pl.pallas_call(
        _gt_notfirst_tiled_kernel,
        out_shape=jax.ShapeDtypeStruct((C_out, N_pad, N_pad), A_pad.dtype),
        grid_spec=pltpu.PrefetchScalarGridSpec(
            num_scalar_prefetch=0,
            grid=(C_out, nt, nt, nt),
            in_specs=[
                pl.BlockSpec(memory_space=pltpu.MemorySpace.SMEM),
                pl.BlockSpec((1, tile, tile), lambda o, i, j, k: (o, i, k)),
                pl.BlockSpec((C_in, tile, tile), lambda o, i, j, k: (0, k, j)),
            ],
            out_specs=pl.BlockSpec((1, tile, tile), lambda o, i, j, k: (o, i, j)),
            scratch_shapes=[pltpu.VMEM((tile, tile), jnp.float32)],
        ),
        compiler_params=pltpu.CompilerParams(
            dimension_semantics=("parallel", "parallel", "parallel", "arbitrary")),
    )(sw1, H_prev_pad, A_pad)


# ---------------------------------------------------------------------------
# Wrapper (GTLayer.forward equivalent)
# ---------------------------------------------------------------------------

def gt_layer_forward(A, w1, w2=None, H_prev=None, first=True,
                     *, force_tiled=False, tile=None):
    """JAX/Pallas equivalent of GTLayer.forward.

    A       : (C_in, N, N)   channel-major stack of adjacency matrices
    w1, w2  : (C_out, C_in, 1, 1)  raw GTConv weights (w2 only for first=True)
    H_prev  : (C_out, N, N)  only for first=False
    Returns (H, W) matching the PyTorch module.
    """
    A = jnp.asarray(A, dtype=jnp.float32)
    C_in, N, _ = A.shape

    sw1_full = jax.nn.softmax(jnp.asarray(w1, jnp.float32), axis=1)
    sw1 = sw1_full[:, :, 0, 0]                       # (C_out, C_in) for SMEM
    if first:
        assert w2 is not None
        sw2_full = jax.nn.softmax(jnp.asarray(w2, jnp.float32), axis=1)
        sw2 = sw2_full[:, :, 0, 0]
    else:
        assert H_prev is not None
        H_prev = jnp.asarray(H_prev, jnp.float32)

    # Pad N to a lane-dense multiple of 128 (zero padding is exact here).
    N_pad = _round_up(N, 128)
    A_pad = A
    Hp_pad = H_prev
    if N_pad != N:
        A_pad = jnp.pad(A, ((0, 0), (0, N_pad - N), (0, N_pad - N)))
        if H_prev is not None:
            Hp_pad = jnp.pad(H_prev, ((0, 0), (0, N_pad - N), (0, N_pad - N)))

    use_small = (not force_tiled) and N_pad <= 256
    if not use_small:
        if tile is None:
            # 256-aligned tiles feed the v6e/v7x 256x256 MXU; per-step VMEM
            # (2 A-views x 2 bufs x C_in x 256^2 x 4B + out + acc) stays well
            # under the smallest default scoped VMEM (v5e: 16 MiB) for small
            # C_in; fall back to 128 if 256 does not divide N_pad.
            tile = 256 if N_pad % 256 == 0 else 128
        assert N_pad % tile == 0

    if first:
        if use_small:
            H = _small_call_first(sw1, sw2, A_pad)
        else:
            H = _tiled_call_first(sw1, sw2, A_pad, tile)
        W = [sw1_full, sw2_full]
    else:
        if use_small:
            H = _small_call_notfirst(sw1, Hp_pad, A_pad)
        else:
            H = _tiled_call_notfirst(sw1, Hp_pad, A_pad, tile)
        W = [sw1_full]

    if N_pad != N:
        H = H[:, :N, :N]
    return H, W


# ---------------------------------------------------------------------------
# Self-test
# ---------------------------------------------------------------------------

def _check(name, got, want, tol=2.5e-2):
    err = float(jnp.max(jnp.abs(got - want)))
    scale = float(jnp.max(jnp.abs(want))) + 1e-6
    assert err <= tol * scale, f"{name}: rel err {err / scale:.4f} (abs {err:.4f})"


if __name__ == "__main__":
    key = jax.random.PRNGKey(0)
    k1, k2, k3, k4, k5, k6 = jax.random.split(key, 6)

    # ---- case 1: small path (single grid step), N multiple of 128 ---------
    C_in, C_out, N = 4, 3, 128
    A = jax.random.normal(k1, (C_in, N, N), dtype=jnp.float32)
    # GTConv.reset_parameters uses constant 0.1; perturb so softmax over
    # in_channels is non-degenerate.
    w1 = jnp.full((C_out, C_in, 1, 1), 0.1, jnp.float32) + \
        0.05 * jax.random.normal(k2, (C_out, C_in, 1, 1), jnp.float32)
    w2 = jnp.full((C_out, C_in, 1, 1), 0.1, jnp.float32) + \
        0.05 * jax.random.normal(k3, (C_out, C_in, 1, 1), jnp.float32)

    H, W = gt_layer_forward(A, w1, w2, first=True)
    H = jax.block_until_ready(H)

    sw1 = jax.nn.softmax(w1, axis=1)[:, :, 0, 0]
    sw2 = jax.nn.softmax(w2, axis=1)[:, :, 0, 0]
    a_ref = jnp.einsum("oc,cij->oij", sw1, A)
    b_ref = jnp.einsum("oc,cij->oij", sw2, A)
    H_ref = jnp.einsum("oij,ojk->oik", a_ref, b_ref)
    assert H.shape == (C_out, N, N)
    _check("first/small", H, H_ref)
    assert len(W) == 2 and W[0].shape == (C_out, C_in, 1, 1)

    H2, W2 = gt_layer_forward(A, w1, first=False, H_prev=H)
    H2 = jax.block_until_ready(H2)
    H2_ref = jnp.einsum("oij,ojk->oik", H, a_ref)   # same H_prev as the kernel
    _check("notfirst/small", H2, H2_ref)
    assert len(W2) == 1

    # ---- case 2: tiled path, non-128 N (padding) + multi-step K reduction --
    C_in2, C_out2, N2 = 3, 2, 200          # pads to 256; tile=128 -> grid (2,2,2,2)
    A2 = jax.random.normal(k4, (C_in2, N2, N2), dtype=jnp.float32)
    w1b = jnp.full((C_out2, C_in2, 1, 1), 0.1, jnp.float32) + \
        0.05 * jax.random.normal(k5, (C_out2, C_in2, 1, 1), jnp.float32)
    w2b = jnp.full((C_out2, C_in2, 1, 1), 0.1, jnp.float32) + \
        0.05 * jax.random.normal(k6, (C_out2, C_in2, 1, 1), jnp.float32)

    Hb, Wb = gt_layer_forward(A2, w1b, w2b, first=True,
                              force_tiled=True, tile=128)
    Hb = jax.block_until_ready(Hb)

    sw1b = jax.nn.softmax(w1b, axis=1)[:, :, 0, 0]
    sw2b = jax.nn.softmax(w2b, axis=1)[:, :, 0, 0]
    a2_ref = jnp.einsum("oc,cij->oij", sw1b, A2)
    b2_ref = jnp.einsum("oc,cij->oij", sw2b, A2)
    Hb_ref = jnp.einsum("oij,ojk->oik", a2_ref, b2_ref)
    assert Hb.shape == (C_out2, N2, N2)
    _check("first/tiled", Hb, Hb_ref)
    assert len(Wb) == 2 and Wb[0].shape == (C_out2, C_in2, 1, 1)

    H2b, W2b = gt_layer_forward(A2, w1b, first=False, H_prev=Hb,
                                force_tiled=True, tile=128)
    H2b = jax.block_until_ready(H2b)
    H2b_ref = jnp.einsum("oij,ojk->oik", Hb, a2_ref)
    _check("notfirst/tiled", H2b, H2b_ref)
    assert len(W2b) == 1

    print("KERNEL_OK")
</pallas_src>

<mosaic_0001>
module attributes {stable_mosaic.version = 11 : i64} {
  func.func @_gt_first_small_kernel(%arg0: i32, %arg1: memref<3x4xf32, #tpu.memory_space<smem>>, %arg2: memref<3x4xf32, #tpu.memory_space<smem>>, %arg3: memref<4x128x128xf32, #tpu.memory_space<vmem>>, %arg4: memref<3x128x128xf32, #tpu.memory_space<vmem>>) attributes {dimension_semantics = [#tpu.dimension_semantics<arbitrary>], iteration_bounds = array<i64: 1>, scalar_prefetch = 0 : i64, scratch_operands = 0 : i64, tpu.core_type = #tpu.core_type<tc>, window_params = [{transform_indices = @transform_0, window_bounds = array<i64: 3, 4>}, {transform_indices = @transform_1, window_bounds = array<i64: 3, 4>}, {pipeline_mode = #tpu.pipeline_mode<synchronous>, transform_indices = @transform_2, window_bounds = array<i64: 4, 128, 128>}, {pipeline_mode = #tpu.pipeline_mode<synchronous>, transform_indices = @transform_3, window_bounds = array<i64: 3, 128, 128>}]} {
    %c0 = arith.constant 0 : index
    %c0_0 = arith.constant 0 : index
    %0 = memref.load %arg1[%c0, %c0_0] : memref<3x4xf32, #tpu.memory_space<smem>>
    %c0_1 = arith.constant 0 : index
    %c0_2 = arith.constant 0 : index
    %c0_3 = arith.constant 0 : index
    %1 = vector.load %arg3[%c0_1, %c0_2, %c0_3] : memref<4x128x128xf32, #tpu.memory_space<vmem>>, vector<1x128x128xf32>
    %2 = vector.shape_cast %1 : vector<1x128x128xf32> to vector<128x128xf32>
    %3 = vector.broadcast %0 : f32 to vector<128x128xf32>
    %4 = arith.mulf %3, %2 : vector<128x128xf32>
    %c0_4 = arith.constant 0 : index
    %c0_5 = arith.constant 0 : index
    %5 = memref.load %arg2[%c0_4, %c0_5] : memref<3x4xf32, #tpu.memory_space<smem>>
    %c0_6 = arith.constant 0 : index
    %c0_7 = arith.constant 0 : index
    %c0_8 = arith.constant 0 : index
    %6 = vector.load %arg3[%c0_6, %c0_7, %c0_8] : memref<4x128x128xf32, #tpu.memory_space<vmem>>, vector<1x128x128xf32>
    %7 = vector.shape_cast %6 : vector<1x128x128xf32> to vector<128x128xf32>
    %8 = vector.broadcast %5 : f32 to vector<128x128xf32>
    %9 = arith.mulf %8, %7 : vector<128x128xf32>
    %c1 = arith.constant 1 : index
    %c0_9 = arith.constant 0 : index
    %c0_10 = arith.constant 0 : index
    %10 = vector.load %arg3[%c1, %c0_9, %c0_10] : memref<4x128x128xf32, #tpu.memory_space<vmem>>, vector<1x128x128xf32>
    %11 = vector.shape_cast %10 : vector<1x128x128xf32> to vector<128x128xf32>
    %c0_11 = arith.constant 0 : index
    %c1_12 = arith.constant 1 : index
    %12 = memref.load %arg1[%c0_11, %c1_12] : memref<3x4xf32, #tpu.memory_space<smem>>
    %13 = vector.broadcast %12 : f32 to vector<128x128xf32>
    %14 = arith.mulf %13, %11 : vector<128x128xf32>
    %15 = arith.addf %4, %14 : vector<128x128xf32>
    %c0_13 = arith.constant 0 : index
    %c1_14 = arith.constant 1 : index
    %16 = memref.load %arg2[%c0_13, %c1_14] : memref<3x4xf32, #tpu.memory_space<smem>>
    %17 = vector.broadcast %16 : f32 to vector<128x128xf32>
    %18 = arith.mulf %17, %11 : vector<128x128xf32>
    %19 = arith.addf %9, %18 : vector<128x128xf32>
    %c2 = arith.constant 2 : index
    %c0_15 = arith.constant 0 : index
    %c0_16 = arith.constant 0 : index
    %20 = vector.load %arg3[%c2, %c0_15, %c0_16] : memref<4x128x128xf32, #tpu.memory_space<vmem>>, vector<1x128x128xf32>
    %21 = vector.shape_cast %20 : vector<1x128x128xf32> to vector<128x128xf32>
    %c0_17 = arith.constant 0 : index
    %c2_18 = arith.constant 2 : index
    %22 = memref.load %arg1[%c0_17, %c2_18] : memref<3x4xf32, #tpu.memory_space<smem>>
    %23 = vector.broadcast %22 : f32 to vector<128x128xf32>
    %24 = arith.mulf %23, %21 : vector<128x128xf32>
    %25 = arith.addf %15, %24 : vector<128x128xf32>
    %c0_19 = arith.constant 0 : index
    %c2_20 = arith.constant 2 : index
    %26 = memref.load %arg2[%c0_19, %c2_20] : memref<3x4xf32, #tpu.memory_space<smem>>
    %27 = vector.broadcast %26 : f32 to vector<128x128xf32>
    %28 = arith.mulf %27, %21 : vector<128x128xf32>
    %29 = arith.addf %19, %28 : vector<128x128xf32>
    %c3 = arith.constant 3 : index
    %c0_21 = arith.constant 0 : index
    %c0_22 = arith.constant 0 : index
    %30 = vector.load %arg3[%c3, %c0_21, %c0_22] : memref<4x128x128xf32, #tpu.memory_space<vmem>>, vector<1x128x128xf32>
    %31 = vector.shape_cast %30 : vector<1x128x128xf32> to vector<128x128xf32>
    %c0_23 = arith.constant 0 : index
    %c3_24 = arith.constant 3 : index
    %32 = memref.load %arg1[%c0_23, %c3_24] : memref<3x4xf32, #tpu.memory_space<smem>>
    %33 = vector.broadcast %32 : f32 to vector<128x128xf32>
    %34 = arith.mulf %33, %31 : vector<128x128xf32>
    %35 = arith.addf %25, %34 : vector<128x128xf32>
    %c0_25 = arith.constant 0 : index
    %c3_26 = arith.constant 3 : index
    %36 = memref.load %arg2[%c0_25, %c3_26] : memref<3x4xf32, #tpu.memory_space<smem>>
    %37 = vector.broadcast %36 : f32 to vector<128x128xf32>
    %38 = arith.mulf %37, %31 : vector<128x128xf32>
    %39 = arith.addf %29, %38 : vector<128x128xf32>
    %40 = arith.truncf %35 : vector<128x128xf32> to vector<128x128xbf16>
    %41 = arith.truncf %39 : vector<128x128xf32> to vector<128x128xbf16>
    %cst = arith.constant dense<0.000000e+00> : vector<128x128xf32>
    %42 = tpu.matmul %40, %41, %cst {dimension_numbers = #tpu.dot_dimension_numbers<[1], [0], [0], [1], [0, 0, 1, 1], [], []>} : vector<128x128xbf16>, vector<128x128xbf16>, vector<128x128xf32> -> vector<128x128xf32>
    %c0_27 = arith.constant 0 : index
    %c0_28 = arith.constant 0 : index
    %c0_29 = arith.constant 0 : index
    %43 = vector.load %arg4[%c0_27, %c0_28, %c0_29] : memref<3x128x128xf32, #tpu.memory_space<vmem>>, vector<1x128x128xf32>
    %44 = vector.shape_cast %43 : vector<1x128x128xf32> to vector<128x128xf32>
    %45 = vector.shape_cast %42 : vector<128x128xf32> to vector<1x128x128xf32>
    tpu.vector_store %arg4[%c0_27, %c0_28, %c0_29], %45 {strides = array<i32>} : memref<3x128x128xf32, #tpu.memory_space<vmem>>, vector<1x128x128xf32>,
    %c1_30 = arith.constant 1 : index
    %c0_31 = arith.constant 0 : index
    %46 = memref.load %arg1[%c1_30, %c0_31] : memref<3x4xf32, #tpu.memory_space<smem>>
    %c0_32 = arith.constant 0 : index
    %c0_33 = arith.constant 0 : index
    %c0_34 = arith.constant 0 : index
    %47 = vector.load %arg3[%c0_32, %c0_33, %c0_34] : memref<4x128x128xf32, #tpu.memory_space<vmem>>, vector<1x128x128xf32>
    %48 = vector.shape_cast %47 : vector<1x128x128xf32> to vector<128x128xf32>
    %49 = vector.broadcast %46 : f32 to vector<128x128xf32>
    %50 = arith.mulf %49, %48 : vector<128x128xf32>
    %c1_35 = arith.constant 1 : index
    %c0_36 = arith.constant 0 : index
    %51 = memref.load %arg2[%c1_35, %c0_36] : memref<3x4xf32, #tpu.memory_space<smem>>
    %c0_37 = arith.constant 0 : index
    %c0_38 = arith.constant 0 : index
    %c0_39 = arith.constant 0 : index
    %52 = vector.load %arg3[%c0_37, %c0_38, %c0_39] : memref<4x128x128xf32, #tpu.memory_space<vmem>>, vector<1x128x128xf32>
    %53 = vector.shape_cast %52 : vector<1x128x128xf32> to vector<128x128xf32>
    %54 = vector.broadcast %51 : f32 to vector<128x128xf32>
    %55 = arith.mulf %54, %53 : vector<128x128xf32>
    %c1_40 = arith.constant 1 : index
    %c0_41 = arith.constant 0 : index
    %c0_42 = arith.constant 0 : index
    %56 = vector.load %arg3[%c1_40, %c0_41, %c0_42] : memref<4x128x128xf32, #tpu.memory_space<vmem>>, vector<1x128x128xf32>
    %57 = vector.shape_cast %56 : vector<1x128x128xf32> to vector<128x128xf32>
    %c1_43 = arith.constant 1 : index
    %c1_44 = arith.constant 1 : index
    %58 = memref.load %arg1[%c1_43, %c1_44] : memref<3x4xf32, #tpu.memory_space<smem>>
    %59 = vector.broadcast %58 : f32 to vector<128x128xf32>
    %60 = arith.mulf %59, %57 : vector<128x128xf32>
    %61 = arith.addf %50, %60 : vector<128x128xf32>
    %c1_45 = arith.constant 1 : index
    %c1_46 = arith.constant 1 : index
    %62 = memref.load %arg2[%c1_45, %c1_46] : memref<3x4xf32, #tpu.memory_space<smem>>
    %63 = vector.broadcast %62 : f32 to vector<128x128xf32>
    %64 = arith.mulf %63, %57 : vector<128x128xf32>
    %65 = arith.addf %55, %64 : vector<128x128xf32>
    %c2_47 = arith.constant 2 : index
    %c0_48 = arith.constant 0 : index
    %c0_49 = arith.constant 0 : index
    %66 = vector.load %arg3[%c2_47, %c0_48, %c0_49] : memref<4x128x128xf32, #tpu.memory_space<vmem>>, vector<1x128x128xf32>
    %67 = vector.shape_cast %66 : vector<1x128x128xf32> to vector<128x128xf32>
    %c1_50 = arith.constant 1 : index
    %c2_51 = arith.constant 2 : index
    %68 = memref.load %arg1[%c1_50, %c2_51] : memref<3x4xf32, #tpu.memory_space<smem>>
    %69 = vector.broadcast %68 : f32 to vector<128x128xf32>
    %70 = arith.mulf %69, %67 : vector<128x128xf32>
    %71 = arith.addf %61, %70 : vector<128x128xf32>
    %c1_52 = arith.constant 1 : index
    %c2_53 = arith.constant 2 : index
    %72 = memref.load %arg2[%c1_52, %c2_53] : memref<3x4xf32, #tpu.memory_space<smem>>
    %73 = vector.broadcast %72 : f32 to vector<128x128xf32>
    %74 = arith.mulf %73, %67 : vector<128x128xf32>
    %75 = arith.addf %65, %74 : vector<128x128xf32>
    %c3_54 = arith.constant 3 : index
    %c0_55 = arith.constant 0 : index
    %c0_56 = arith.constant 0 : index
    %76 = vector.load %arg3[%c3_54, %c0_55, %c0_56] : memref<4x128x128xf32, #tpu.memory_space<vmem>>, vector<1x128x128xf32>
    %77 = vector.shape_cast %76 : vector<1x128x128xf32> to vector<128x128xf32>
    %c1_57 = arith.constant 1 : index
    %c3_58 = arith.constant 3 : index
    %78 = memref.load %arg1[%c1_57, %c3_58] : memref<3x4xf32, #tpu.memory_space<smem>>
    %79 = vector.broadcast %78 : f32 to vector<128x128xf32>
    %80 = arith.mulf %79, %77 : vector<128x128xf32>
    %81 = arith.addf %71, %80 : vector<128x128xf32>
    %c1_59 = arith.constant 1 : index
    %c3_60 = arith.constant 3 : index
    %82 = memref.load %arg2[%c1_59, %c3_60] : memref<3x4xf32, #tpu.memory_space<smem>>
    %83 = vector.broadcast %82 : f32 to vector<128x128xf32>
    %84 = arith.mulf %83, %77 : vector<128x128xf32>
    %85 = arith.addf %75, %84 : vector<128x128xf32>
    %86 = arith.truncf %81 : vector<128x128xf32> to vector<128x128xbf16>
    %87 = arith.truncf %85 : vector<128x128xf32> to vector<128x128xbf16>
    %cst_61 = arith.constant dense<0.000000e+00> : vector<128x128xf32>
    %88 = tpu.matmul %86, %87, %cst_61 {dimension_numbers = #tpu.dot_dimension_numbers<[1], [0], [0], [1], [0, 0, 1, 1], [], []>} : vector<128x128xbf16>, vector<128x128xbf16>, vector<128x128xf32> -> vector<128x128xf32>
    %c1_62 = arith.constant 1 : index
    %c0_63 = arith.constant 0 : index
    %c0_64 = arith.constant 0 : index
    %89 = vector.load %arg4[%c1_62, %c0_63, %c0_64] : memref<3x128x128xf32, #tpu.memory_space<vmem>>, vector<1x128x128xf32>
    %90 = vector.shape_cast %89 : vector<1x128x128xf32> to vector<128x128xf32>
    %91 = vector.shape_cast %88 : vector<128x128xf32> to vector<1x128x128xf32>
    tpu.vector_store %arg4[%c1_62, %c0_63, %c0_64], %91 {strides = array<i32>} : memref<3x128x128xf32, #tpu.memory_space<vmem>>, vector<1x128x128xf32>,
    %c2_65 = arith.constant 2 : index
    %c0_66 = arith.constant 0 : index
    %92 = memref.load %arg1[%c2_65, %c0_66] : memref<3x4xf32, #tpu.memory_space<smem>>
    %c0_67 = arith.constant 0 : index
    %c0_68 = arith.constant 0 : index
    %c0_69 = arith.constant 0 : index
    %93 = vector.load %arg3[%c0_67, %c0_68, %c0_69] : memref<4x128x128xf32, #tpu.memory_space<vmem>>, vector<1x128x128xf32>
    %94 = vector.shape_cast %93 : vector<1x128x128xf32> to vector<128x128xf32>
    %95 = vector.broadcast %92 : f32 to vector<128x128xf32>
    %96 = arith.mulf %95, %94 : vector<128x128xf32>
    %c2_70 = arith.constant 2 : index
    %c0_71 = arith.constant 0 : index
    %97 = memref.load %arg2[%c2_70, %c0_71] : memref<3x4xf32, #tpu.memory_space<smem>>
    %c0_72 = arith.constant 0 : index
    %c0_73 = arith.constant 0 : index
    %c0_74 = arith.constant 0 : index
    %98 = vector.load %arg3[%c0_72, %c0_73, %c0_74] : memref<4x128x128xf32, #tpu.memory_space<vmem>>, vector<1x128x128xf32>
    %99 = vector.shape_cast %98 : vector<1x128x128xf32> to vector<128x128xf32>
    %100 = vector.broadcast %97 : f32 to vector<128x128xf32>
    %101 = arith.mulf %100, %99 : vector<128x128xf32>
    %c1_75 = arith.constant 1 : index
    %c0_76 = arith.constant 0 : index
    %c0_77 = arith.constant 0 : index
    %102 = vector.load %arg3[%c1_75, %c0_76, %c0_77] : memref<4x128x128xf32, #tpu.memory_space<vmem>>, vector<1x128x128xf32>
    %103 = vector.shape_cast %102 : vector<1x128x128xf32> to vector<128x128xf32>
    %c2_78 = arith.constant 2 : index
    %c1_79 = arith.constant 1 : index
    %104 = memref.load %arg1[%c2_78, %c1_79] : memref<3x4xf32, #tpu.memory_space<smem>>
    %105 = vector.broadcast %104 : f32 to vector<128x128xf32>
    %106 = arith.mulf %105, %103 : vector<128x128xf32>
    %107 = arith.addf %96, %106 : vector<128x128xf32>
    %c2_80 = arith.constant 2 : index
    %c1_81 = arith.constant 1 : index
    %108 = memref.load %arg2[%c2_80, %c1_81] : memref<3x4xf32, #tpu.memory_space<smem>>
    %109 = vector.broadcast %108 : f32 to vector<128x128xf32>
    %110 = arith.mulf %109, %103 : vector<128x128xf32>
    %111 = arith.addf %101, %110 : vector<128x128xf32>
    %c2_82 = arith.constant 2 : index
    %c0_83 = arith.constant 0 : index
    %c0_84 = arith.constant 0 : index
    %112 = vector.load %arg3[%c2_82, %c0_83, %c0_84] : memref<4x128x128xf32, #tpu.memory_space<vmem>>, vector<1x128x128xf32>
    %113 = vector.shape_cast %112 : vector<1x128x128xf32> to vector<128x128xf32>
    %c2_85 = arith.constant 2 : index
    %c2_86 = arith.constant 2 : index
    %114 = memref.load %arg1[%c2_85, %c2_86] : memref<3x4xf32, #tpu.memory_space<smem>>
    %115 = vector.broadcast %114 : f32 to vector<128x128xf32>
    %116 = arith.mulf %115, %113 : vector<128x128xf32>
    %117 = arith.addf %107, %116 : vector<128x128xf32>
    %c2_87 = arith.constant 2 : index
    %c2_88 = arith.constant 2 : index
    %118 = memref.load %arg2[%c2_87, %c2_88] : memref<3x4xf32, #tpu.memory_space<smem>>
    %119 = vector.broadcast %118 : f32 to vector<128x128xf32>
    %120 = arith.mulf %119, %113 : vector<128x128xf32>
    %121 = arith.addf %111, %120 : vector<128x128xf32>
    %c3_89 = arith.constant 3 : index
    %c0_90 = arith.constant 0 : index
    %c0_91 = arith.constant 0 : index
    %122 = vector.load %arg3[%c3_89, %c0_90, %c0_91] : memref<4x128x128xf32, #tpu.memory_space<vmem>>, vector<1x128x128xf32>
    %123 = vector.shape_cast %122 : vector<1x128x128xf32> to vector<128x128xf32>
    %c2_92 = arith.constant 2 : index
    %c3_93 = arith.constant 3 : index
    %124 = memref.load %arg1[%c2_92, %c3_93] : memref<3x4xf32, #tpu.memory_space<smem>>
    %125 = vector.broadcast %124 : f32 to vector<128x128xf32>
    %126 = arith.mulf %125, %123 : vector<128x128xf32>
    %127 = arith.addf %117, %126 : vector<128x128xf32>
    %c2_94 = arith.constant 2 : index
    %c3_95 = arith.constant 3 : index
    %128 = memref.load %arg2[%c2_94, %c3_95] : memref<3x4xf32, #tpu.memory_space<smem>>
    %129 = vector.broadcast %128 : f32 to vector<128x128xf32>
    %130 = arith.mulf %129, %123 : vector<128x128xf32>
    %131 = arith.addf %121, %130 : vector<128x128xf32>
    %132 = arith.truncf %127 : vector<128x128xf32> to vector<128x128xbf16>
    %133 = arith.truncf %131 : vector<128x128xf32> to vector<128x128xbf16>
    %cst_96 = arith.constant dense<0.000000e+00> : vector<128x128xf32>
    %134 = tpu.matmul %132, %133, %cst_96 {dimension_numbers = #tpu.dot_dimension_numbers<[1], [0], [0], [1], [0, 0, 1, 1], [], []>} : vector<128x128xbf16>, vector<128x128xbf16>, vector<128x128xf32> -> vector<128x128xf32>
    %c2_97 = arith.constant 2 : index
    %c0_98 = arith.constant 0 : index
    %c0_99 = arith.constant 0 : index
    %135 = vector.load %arg4[%c2_97, %c0_98, %c0_99] : memref<3x128x128xf32, #tpu.memory_space<vmem>>, vector<1x128x128xf32>
    %136 = vector.shape_cast %135 : vector<1x128x128xf32> to vector<128x128xf32>
    %137 = vector.shape_cast %134 : vector<128x128xf32> to vector<1x128x128xf32>
    tpu.vector_store %arg4[%c2_97, %c0_98, %c0_99], %137 {strides = array<i32>} : memref<3x128x128xf32, #tpu.memory_space<vmem>>, vector<1x128x128xf32>,
    return
  }
  func.func @transform_0(%arg0: i32) -> (i32, i32) {
    %c0_i32 = arith.constant 0 : i32
    %c0_i32_0 = arith.constant 0 : i32
    %c0_i32_1 = arith.constant 0 : i32
    return %c0_i32, %c0_i32_0 : i32, i32
  }
  func.func @transform_1(%arg0: i32) -> (i32, i32) {
    %c0_i32 = arith.constant 0 : i32
    %c0_i32_0 = arith.constant 0 : i32
    %c0_i32_1 = arith.constant 0 : i32
    return %c0_i32, %c0_i32_0 : i32, i32
  }
  func.func @transform_2(%arg0: i32) -> (i32, i32, i32) {
    %c0_i32 = arith.constant 0 : i32
    %c0_i32_0 = arith.constant 0 : i32
    %c0_i32_1 = arith.constant 0 : i32
    %c0_i32_2 = arith.constant 0 : i32
    return %c0_i32, %c0_i32_0, %c0_i32_1 : i32, i32, i32
  }
  func.func @transform_3(%arg0: i32) -> (i32, i32, i32) {
    %c0_i32 = arith.constant 0 : i32
    %c0_i32_0 = arith.constant 0 : i32
    %c0_i32_1 = arith.constant 0 : i32
    %c0_i32_2 = arith.constant 0 : i32
    return %c0_i32, %c0_i32_0, %c0_i32_1 : i32, i32, i32
  }
}

</mosaic_0001>

<llo_original>
// kernel: tpu_custom_call.1
$region0: #{tpu_custom_call.1}
  #allocation0 [shape = 'u32[]', space=smem, size = 0x4, offset = 0x4, fixed_abs, tag = 'smem constant byte address 0x4 - core index']
  #allocation1 [shape = 'u32[144,128]{1,0:T(1,128)}', space=vmem, size = 0x12000, scoped, tag = 'internal scratch']
  %s0 = inlined_call_operand.hbm [shape: f32[3,4], index: 0, kind: input, shape index: {}]
  %s1 = inlined_call_operand.hbm [shape: f32[3,4], index: 1, kind: input, shape index: {}]
  %s2 = inlined_call_operand.hbm [shape: f32[4,128,128], index: 2, kind: input, shape index: {}]
  %s3 = inlined_call_operand.hbm [shape: f32[3,128,128], index: 3, kind: output, shape index: {}]
  %s4 = sld [smem:[#allocation0]]
  $region34: #{tpu_custom_call.1} parent=0
    _
  %s6 = ssub.s32 1, %s4
  %s7 = scalar_select 0, %s6, %s4
  $region1: #{tpu_custom_call.1} parent=0
    #allocation2 [shape = 'u8[2048]{0}', space=smem, size = 0x800, scoped, tag = 'input window, operand 0, single buffered']
    #allocation3 [shape = 's32[1]{0}', space=sflag, size = 0x4, scoped, tag = 'scoped memory for tpu_custom_call.1']
    #allocation4 [shape = 's32[1]{0}', space=sflag, size = 0x4, scoped, tag = 'scoped memory for tpu_custom_call.1']
    #allocation5 [shape = 's32[1]{0}', space=sflag, size = 0x4, scoped, tag = 'scoped memory for tpu_custom_call.1']
    #allocation6 [shape = 'u8[2048]{0}', space=smem, size = 0x800, scoped, tag = 'input window, operand 1, single buffered']
    #allocation7 [shape = 's32[1]{0}', space=sflag, size = 0x4, scoped, tag = 'scoped memory for tpu_custom_call.1']
    #allocation8 [shape = 'u8[262144]{0}', space=vmem, size = 0x40000, scoped, tag = 'input window, operand 2, single buffered']
    #allocation9 [shape = 'u8[196608]{0}', space=vmem, size = 0x30000, scoped, tag = 'output window, operand 0, single buffered']
    %8 = vsyncpa [#allocation5], 0
    %9 = vsyncpa [#allocation7], 0
    %10 = vsyncpa [#allocation3], 0
    %11 = vsyncpa [#allocation4], 0
    // Predicated region
    $region2: #{tpu_custom_call.1} parent=1 // pred_check
      _
    $region3: #{tpu_custom_call.1} parent=1 // pred_check_branch
      %13 = sbr.rel (0) target = $region5
    $region4: #{tpu_custom_call.1} parent=1 // pred_region
      %s15 = ssub.s32 64, 64
      %16 = vsyncadd [#allocation5], %s15
      %19 = dma.hbm_to_smem %s0, 64, [#allocation2], [#allocation5]
    $region5: #{tpu_custom_call.1} parent=1 // pred_fallthru
      _
    // Predicated region
    $region6: #{tpu_custom_call.1} parent=1 // pred_check
      _
    $region7: #{tpu_custom_call.1} parent=1 // pred_check_branch
      %21 = sbr.rel (0) target = $region9
    $region8: #{tpu_custom_call.1} parent=1 // pred_region
      %s23 = ssub.s32 64, 64
      %24 = vsyncadd [#allocation7], %s23
      %27 = dma.hbm_to_smem %s1, 64, [#allocation6], [#allocation7]
    $region9: #{tpu_custom_call.1} parent=1 // pred_fallthru
      _
    // Predicated region
    $region10: #{tpu_custom_call.1} parent=1 // pred_check
      _
    $region11: #{tpu_custom_call.1} parent=1 // pred_check_branch
      %29 = sbr.rel (0) target = $region13
    $region12: #{tpu_custom_call.1} parent=1 // pred_region
      %s31 = ssub.s32 8192, 8192
      %32 = vsyncadd [#allocation3], %s31
      %s33 = sshll.u32 [#allocation8], 4
      %s34 = int_to_ptr.vmem [resolvable:$true] %s33
      %39 = dma.hbm_to_vmem [thread:$0]  %s2, 8192, %s34, [#allocation3], 128, 128, 8
    $region13: #{tpu_custom_call.1} parent=1 // pred_fallthru
      _
    // Predicated region
    $region14: #{tpu_custom_call.1} parent=1 // pred_check
      _
    $region15: #{tpu_custom_call.1} parent=1 // pred_check_branch
      %41 = sbr.rel (0) target = $region17
    $region16: #{tpu_custom_call.1} parent=1 // pred_region
      %42 = dma.done [#allocation5], 64
    $region17: #{tpu_custom_call.1} parent=1 // pred_fallthru
      _
    // Predicated region
    $region18: #{tpu_custom_call.1} parent=1 // pred_check
      _
    $region19: #{tpu_custom_call.1} parent=1 // pred_check_branch
      %44 = sbr.rel (0) target = $region21
    $region20: #{tpu_custom_call.1} parent=1 // pred_region
      %45 = dma.done [#allocation7], 64
    $region21: #{tpu_custom_call.1} parent=1 // pred_fallthru
      _
    // Predicated region
    $region22: #{tpu_custom_call.1} parent=1 // pred_check
      _
    $region23: #{tpu_custom_call.1} parent=1 // pred_check_branch
      %47 = sbr.rel (0) target = $region25
    $region24: #{tpu_custom_call.1} parent=1 // pred_region
      %48 = dma.done [#allocation3], 8192
    $region25: #{tpu_custom_call.1} parent=1 // pred_fallthru
      _
    %49 = sfence
    %s51 = sld [smem:[#allocation2]]
    %v52 = vld [vmem:[#allocation8] sm:$0xff]
    %v53 = vld [vmem:[#allocation8 + $0x8] sm:$0xff]
    %v54 = vld [vmem:[#allocation8 + $0x10] sm:$0xff]
    %v55 = vld [vmem:[#allocation8 + $0x18] sm:$0xff]
    %v56 = vld [vmem:[#allocation8 + $0x20] sm:$0xff]
    %v57 = vld [vmem:[#allocation8 + $0x28] sm:$0xff]
    %v58 = vld [vmem:[#allocation8 + $0x30] sm:$0xff]
    %v59 = vld [vmem:[#allocation8 + $0x38] sm:$0xff]
    %v60 = vld [vmem:[#allocation8 + $0x40] sm:$0xff]
    %v61 = vld [vmem:[#allocation8 + $0x48] sm:$0xff]
    %v62 = vld [vmem:[#allocation8 + $0x50] sm:$0xff]
    %v63 = vld [vmem:[#allocation8 + $0x58] sm:$0xff]
    %v64 = vld [vmem:[#allocation8 + $0x60] sm:$0xff]
    %v65 = vld [vmem:[#allocation8 + $0x68] sm:$0xff]
    %v66 = vld [vmem:[#allocation8 + $0x70] sm:$0xff]
    %v67 = vld [vmem:[#allocation8 + $0x78] sm:$0xff]
    %v68 = vstv %s51
    %v69 = vmul.f32 %v68, %v52
    %v70 = vmul.f32 %v68, %v53
    %v71 = vmul.f32 %v68, %v54
    %v72 = vmul.f32 %v68, %v55
    %v73 = vmul.f32 %v68, %v56
    %v74 = vmul.f32 %v68, %v57
    %v75 = vmul.f32 %v68, %v58
    %v76 = vmul.f32 %v68, %v59
    %v77 = vmul.f32 %v68, %v60
    %v78 = vmul.f32 %v68, %v61
    %v79 = vmul.f32 %v68, %v62
    %v80 = vmul.f32 %v68, %v63
    %v81 = vmul.f32 %v68, %v64
    %v82 = vmul.f32 %v68, %v65
    %v83 = vmul.f32 %v68, %v66
    %v84 = vmul.f32 %v68, %v67
    %s85 = sld [smem:[#allocation6]]
    %v86 = vstv %s85
    %v87 = vmul.f32 %v86, %v52
    %v88 = vmul.f32 %v86, %v53
    %v89 = vmul.f32 %v86, %v54
    %v90 = vmul.f32 %v86, %v55
    %v91 = vmul.f32 %v86, %v56
    %v92 = vmul.f32 %v86, %v57
    %v93 = vmul.f32 %v86, %v58
    %v94 = vmul.f32 %v86, %v59
    %v95 = vmul.f32 %v86, %v60
    %v96 = vmul.f32 %v86, %v61
    %v97 = vmul.f32 %v86, %v62
    %v98 = vmul.f32 %v86, %v63
    %v99 = vmul.f32 %v86, %v64
    %v100 = vmul.f32 %v86, %v65
    %v101 = vmul.f32 %v86, %v66
    %v102 = vmul.f32 %v86, %v67
    %s103 = scalar_lea.vmem [#allocation8], 128
    %v104 = vld [vmem:[%s103] sm:$0xff]
    %v105 = vld [vmem:[%s103 + $0x8] sm:$0xff]
    %v106 = vld [vmem:[%s103 + $0x10] sm:$0xff]
    %v107 = vld [vmem:[%s103 + $0x18] sm:$0xff]
    %v108 = vld [vmem:[%s103 + $0x20] sm:$0xff]
    %v109 = vld [vmem:[%s103 + $0x28] sm:$0xff]
    %v110 = vld [vmem:[%s103 + $0x30] sm:$0xff]
    %v111 = vld [vmem:[%s103 + $0x38] sm:$0xff]
    %v112 = vld [vmem:[%s103 + $0x40] sm:$0xff]
    %v113 = vld [vmem:[%s103 + $0x48] sm:$0xff]
    %v114 = vld [vmem:[%s103 + $0x50] sm:$0xff]
    %v115 = vld [vmem:[%s103 + $0x58] sm:$0xff]
    %v116 = vld [vmem:[%s103 + $0x60] sm:$0xff]
    %v117 = vld [vmem:[%s103 + $0x68] sm:$0xff]
    %v118 = vld [vmem:[%s103 + $0x70] sm:$0xff]
    %v119 = vld [vmem:[%s103 + $0x78] sm:$0xff]
    %s120 = sld [smem:[#allocation2 + $0x1]]
    %v121 = vstv %s120
    %v122 = vmul.f32 %v121, %v104
    %v123 = vmul.f32 %v121, %v105
    %v124 = vmul.f32 %v121, %v106
    %v125 = vmul.f32 %v121, %v107
    %v126 = vmul.f32 %v121, %v108
    %v127 = vmul.f32 %v121, %v109
    %v128 = vmul.f32 %v121, %v110
    %v129 = vmul.f32 %v121, %v111
    %v130 = vmul.f32 %v121, %v112
    %v131 = vmul.f32 %v121, %v113
    %v132 = vmul.f32 %v121, %v114
    %v133 = vmul.f32 %v121, %v115
    %v134 = vmul.f32 %v121, %v116
    %v135 = vmul.f32 %v121, %v117
    %v136 = vmul.f32 %v121, %v118
    %v137 = vmul.f32 %v121, %v119
    %v138 = vadd.f32 %v69, %v122
    %v139 = vadd.f32 %v70, %v123
    %v140 = vadd.f32 %v71, %v124
    %v141 = vadd.f32 %v72, %v125
    %v142 = vadd.f32 %v73, %v126
    %v143 = vadd.f32 %v74, %v127
    %v144 = vadd.f32 %v75, %v128
    %v145 = vadd.f32 %v76, %v129
    %v146 = vadd.f32 %v77, %v130
    %v147 = vadd.f32 %v78, %v131
    %v148 = vadd.f32 %v79, %v132
    %v149 = vadd.f32 %v80, %v133
    %v150 = vadd.f32 %v81, %v134
    %v151 = vadd.f32 %v82, %v135
    %v152 = vadd.f32 %v83, %v136
    %v153 = vadd.f32 %v84, %v137
    %s154 = sld [smem:[#allocation6 + $0x1]]
    %v155 = vstv %s154
    %v156 = vmul.f32 %v155, %v104
    %v157 = vmul.f32 %v155, %v105
    %v158 = vmul.f32 %v155, %v106
    %v159 = vmul.f32 %v155, %v107
    %v160 = vmul.f32 %v155, %v108
    %v161 = vmul.f32 %v155, %v109
    %v162 = vmul.f32 %v155, %v110
    %v163 = vmul.f32 %v155, %v111
    %v164 = vmul.f32 %v155, %v112
    %v165 = vmul.f32 %v155, %v113
    %v166 = vmul.f32 %v155, %v114
    %v167 = vmul.f32 %v155, %v115
    %v168 = vmul.f32 %v155, %v116
    %v169 = vmul.f32 %v155, %v117
    %v170 = vmul.f32 %v155, %v118
    %v171 = vmul.f32 %v155, %v119
    %v172 = vadd.f32 %v87, %v156
    %v173 = vadd.f32 %v88, %v157
    %v174 = vadd.f32 %v89, %v158
    %v175 = vadd.f32 %v90, %v159
    %v176 = vadd.f32 %v91, %v160
    %v177 = vadd.f32 %v92, %v161
    %v178 = vadd.f32 %v93, %v162
    %v179 = vadd.f32 %v94, %v163
    %v180 = vadd.f32 %v95, %v164
    %v181 = vadd.f32 %v96, %v165
    %v182 = vadd.f32 %v97, %v166
    %v183 = vadd.f32 %v98, %v167
    %v184 = vadd.f32 %v99, %v168
    %v185 = vadd.f32 %v100, %v169
    %v186 = vadd.f32 %v101, %v170
    %v187 = vadd.f32 %v102, %v171
    %s188 = scalar_lea.vmem [#allocation8], 256
    %v189 = vld [vmem:[%s188] sm:$0xff]
    %v190 = vld [vmem:[%s188 + $0x8] sm:$0xff]
    %v191 = vld [vmem:[%s188 + $0x10] sm:$0xff]
    %v192 = vld [vmem:[%s188 + $0x18] sm:$0xff]
    %v193 = vld [vmem:[%s188 + $0x20] sm:$0xff]
    %v194 = vld [vmem:[%s188 + $0x28] sm:$0xff]
    %v195 = vld [vmem:[%s188 + $0x30] sm:$0xff]
    %v196 = vld [vmem:[%s188 + $0x38] sm:$0xff]
    %v197 = vld [vmem:[%s188 + $0x40] sm:$0xff]
    %v198 = vld [vmem:[%s188 + $0x48] sm:$0xff]
    %v199 = vld [vmem:[%s188 + $0x50] sm:$0xff]
    %v200 = vld [vmem:[%s188 + $0x58] sm:$0xff]
    %v201 = vld [vmem:[%s188 + $0x60] sm:$0xff]
    %v202 = vld [vmem:[%s188 + $0x68] sm:$0xff]
    %v203 = vld [vmem:[%s188 + $0x70] sm:$0xff]
    %v204 = vld [vmem:[%s188 + $0x78] sm:$0xff]
    %s205 = sld [smem:[#allocation2 + $0x2]]
    %v206 = vstv %s205
    %v207 = vmul.f32 %v206, %v189
    %v208 = vmul.f32 %v206, %v190
    %v209 = vmul.f32 %v206, %v191
    %v210 = vmul.f32 %v206, %v192
    %v211 = vmul.f32 %v206, %v193
    %v212 = vmul.f32 %v206, %v194
    %v213 = vmul.f32 %v206, %v195
    %v214 = vmul.f32 %v206, %v196
    %v215 = vmul.f32 %v206, %v197
    %v216 = vmul.f32 %v206, %v198
    %v217 = vmul.f32 %v206, %v199
    %v218 = vmul.f32 %v206, %v200
    %v219 = vmul.f32 %v206, %v201
    %v220 = vmul.f32 %v206, %v202
    %v221 = vmul.f32 %v206, %v203
    %v222 = vmul.f32 %v206, %v204
    %v223 = vadd.f32 %v138, %v207
    %v224 = vadd.f32 %v139, %v208
    %v225 = vadd.f32 %v140, %v209
    %v226 = vadd.f32 %v141, %v210
    %v227 = vadd.f32 %v142, %v211
    %v228 = vadd.f32 %v143, %v212
    %v229 = vadd.f32 %v144, %v213
    %v230 = vadd.f32 %v145, %v214
    %v231 = vadd.f32 %v146, %v215
    %v232 = vadd.f32 %v147, %v216
    %v233 = vadd.f32 %v148, %v217
    %v234 = vadd.f32 %v149, %v218
    %v235 = vadd.f32 %v150, %v219
    %v236 = vadd.f32 %v151, %v220
    %v237 = vadd.f32 %v152, %v221
    %v238 = vadd.f32 %v153, %v222
    %s239 = sld [smem:[#allocation6 + $0x2]]
    %v240 = vstv %s239
    %v241 = vmul.f32 %v240, %v189
    %v242 = vmul.f32 %v240, %v190
    %v243 = vmul.f32 %v240, %v191
    %v244 = vmul.f32 %v240, %v192
    %v245 = vmul.f32 %v240, %v193
    %v246 = vmul.f32 %v240, %v194
    %v247 = vmul.f32 %v240, %v195
    %v248 = vmul.f32 %v240, %v196
    %v249 = vmul.f32 %v240, %v197
    %v250 = vmul.f32 %v240, %v198
    %v251 = vmul.f32 %v240, %v199
    %v252 = vmul.f32 %v240, %v200
    %v253 = vmul.f32 %v240, %v201
    %v254 = vmul.f32 %v240, %v202
    %v255 = vmul.f32 %v240, %v203
    %v256 = vmul.f32 %v240, %v204
    %v257 = vadd.f32 %v172, %v241
    %v258 = vadd.f32 %v173, %v242
    %v259 = vadd.f32 %v174, %v243
    %v260 = vadd.f32 %v175, %v244
    %v261 = vadd.f32 %v176, %v245
    %v262 = vadd.f32 %v177, %v246
    %v263 = vadd.f32 %v178, %v247
    %v264 = vadd.f32 %v179, %v248
    %v265 = vadd.f32 %v180, %v249
    %v266 = vadd.f32 %v181, %v250
    %v267 = vadd.f32 %v182, %v251
    %v268 = vadd.f32 %v183, %v252
    %v269 = vadd.f32 %v184, %v253
    %v270 = vadd.f32 %v185, %v254
    %v271 = vadd.f32 %v186, %v255
    %v272 = vadd.f32 %v187, %v256
    %s273 = scalar_lea.vmem [#allocation8], 384
    %v274 = vld [vmem:[%s273] sm:$0xff]
    %v275 = vld [vmem:[%s273 + $0x8] sm:$0xff]
    %v276 = vld [vmem:[%s273 + $0x10] sm:$0xff]
    %v277 = vld [vmem:[%s273 + $0x18] sm:$0xff]
    %v278 = vld [vmem:[%s273 + $0x20] sm:$0xff]
    %v279 = vld [vmem:[%s273 + $0x28] sm:$0xff]
    %v280 = vld [vmem:[%s273 + $0x30] sm:$0xff]
    %v281 = vld [vmem:[%s273 + $0x38] sm:$0xff]
    %v282 = vld [vmem:[%s273 + $0x40] sm:$0xff]
    %v283 = vld [vmem:[%s273 + $0x48] sm:$0xff]
    %v284 = vld [vmem:[%s273 + $0x50] sm:$0xff]
    %v285 = vld [vmem:[%s273 + $0x58] sm:$0xff]
    %v286 = vld [vmem:[%s273 + $0x60] sm:$0xff]
    %v287 = vld [vmem:[%s273 + $0x68] sm:$0xff]
    %v288 = vld [vmem:[%s273 + $0x70] sm:$0xff]
    %v289 = vld [vmem:[%s273 + $0x78] sm:$0xff]
    %s290 = sld [smem:[#allocation2 + $0x3]]
    %v291 = vstv %s290
    %v292 = vmul.f32 %v291, %v274
    %v293 = vmul.f32 %v291, %v275
    %v294 = vmul.f32 %v291, %v276
    %v295 = vmul.f32 %v291, %v277
    %v296 = vmul.f32 %v291, %v278
    %v297 = vmul.f32 %v291, %v279
    %v298 = vmul.f32 %v291, %v280
    %v299 = vmul.f32 %v291, %v281
    %v300 = vmul.f32 %v291, %v282
    %v301 = vmul.f32 %v291, %v283
    %v302 = vmul.f32 %v291, %v284
    %v303 = vmul.f32 %v291, %v285
    %v304 = vmul.f32 %v291, %v286
    %v305 = vmul.f32 %v291, %v287
    %v306 = vmul.f32 %v291, %v288
    %v307 = vmul.f32 %v291, %v289
    %v308 = vadd.f32 %v223, %v292
    %v309 = vadd.f32 %v224, %v293
    %v310 = vadd.f32 %v225, %v294
    %v311 = vadd.f32 %v226, %v295
    %v312 = vadd.f32 %v227, %v296
    %v313 = vadd.f32 %v228, %v297
    %v314 = vadd.f32 %v229, %v298
    %v315 = vadd.f32 %v230, %v299
    %v316 = vadd.f32 %v231, %v300
    %v317 = vadd.f32 %v232, %v301
    %v318 = vadd.f32 %v233, %v302
    %v319 = vadd.f32 %v234, %v303
    %v320 = vadd.f32 %v235, %v304
    %v321 = vadd.f32 %v236, %v305
    %v322 = vadd.f32 %v237, %v306
    %v323 = vadd.f32 %v238, %v307
    %s324 = sld [smem:[#allocation6 + $0x3]]
    %v325 = vstv %s324
    %v326 = vmul.f32 %v325, %v274
    %v327 = vmul.f32 %v325, %v275
    %v328 = vmul.f32 %v325, %v276
    %v329 = vmul.f32 %v325, %v277
    %v330 = vmul.f32 %v325, %v278
    %v331 = vmul.f32 %v325, %v279
    %v332 = vmul.f32 %v325, %v280
    %v333 = vmul.f32 %v325, %v281
    %v334 = vmul.f32 %v325, %v282
    %v335 = vmul.f32 %v325, %v283
    %v336 = vmul.f32 %v325, %v284
    %v337 = vmul.f32 %v325, %v285
    %v338 = vmul.f32 %v325, %v286
    %v339 = vmul.f32 %v325, %v287
    %v340 = vmul.f32 %v325, %v288
    %v341 = vmul.f32 %v325, %v289
    %v342 = vadd.f32 %v257, %v326
    %v343 = vadd.f32 %v258, %v327
    %v344 = vadd.f32 %v259, %v328
    %v345 = vadd.f32 %v260, %v329
    %v346 = vadd.f32 %v261, %v330
    %v347 = vadd.f32 %v262, %v331
    %v348 = vadd.f32 %v263, %v332
    %v349 = vadd.f32 %v264, %v333
    %v350 = vadd.f32 %v265, %v334
    %v351 = vadd.f32 %v266, %v335
    %v352 = vadd.f32 %v267, %v336
    %v353 = vadd.f32 %v268, %v337
    %v354 = vadd.f32 %v269, %v338
    %v355 = vadd.f32 %v270, %v339
    %v356 = vadd.f32 %v271, %v340
    %v357 = vadd.f32 %v272, %v341
    %v358 = vpack.c.bf16 %v309, %v308
    %v359 = vpack.c.bf16 %v311, %v310
    %v360 = vpack.c.bf16 %v313, %v312
    %v361 = vpack.c.bf16 %v315, %v314
    %v362 = vpack.c.bf16 %v317, %v316
    %v363 = vpack.c.bf16 %v319, %v318
    %v364 = vpack.c.bf16 %v321, %v320
    %v365 = vpack.c.bf16 %v323, %v322
    %v366 = vpack.c.bf16 %v343, %v342
    %v367 = vpack.c.bf16 %v345, %v344
    %v368 = vpack.c.bf16 %v347, %v346
    %v369 = vpack.c.bf16 %v349, %v348
    %v370 = vpack.c.bf16 %v351, %v350
    %v371 = vpack.c.bf16 %v353, %v352
    %v372 = vpack.c.bf16 %v355, %v354
    %v373 = vpack.c.bf16 %v357, %v356
    %374 = vmatprep.subr.bf16.mxu0 0
    %375 = vmatpush1.bf16.msra.mxu0 %v366
    %376 = vmatprep.subr.bf16.mxu0 0
    %377 = vmatpush1.bf16.msra.mxu0 %v367
    %378 = vmatprep.subr.bf16.mxu0 0
    %379 = vmatpush1.bf16.msra.mxu0 %v368
    %380 = vmatprep.subr.bf16.mxu0 0
    %381 = vmatpush1.bf16.msra.mxu0 %v369
    %382 = vmatprep.subr.bf16.mxu0 0
    %383 = vmatpush1.bf16.msra.mxu0 %v370
    %384 = vmatprep.subr.bf16.mxu0 0
    %385 = vmatpush1.bf16.msra.mxu0 %v371
    %386 = vmatprep.subr.bf16.mxu0 0
    %387 = vmatpush1.bf16.msra.mxu0 %v372
    %388 = vmatprep.subr.bf16.mxu0 0
    %389 = vmatpush1.bf16.msra.mxu0 %v373
    %390 = vmatprep.subr.bf16.mxu0 0
    %391 = vmatpush1.bf16.msra.mxu0 0
    %392 = vmatprep.subr.bf16.mxu0 0
    %393 = vmatpush1.bf16.msra.mxu0 0
    %394 = vmatprep.subr.bf16.mxu0 0
    %395 = vmatpush1.bf16.msra.mxu0 0
    %396 = vmatprep.subr.bf16.mxu0 0
    %397 = vmatpush1.bf16.msra.mxu0 0
    %398 = vmatprep.subr.bf16.mxu0 0
    %399 = vmatpush1.bf16.msra.mxu0 0
    %400 = vmatprep.subr.bf16.mxu0 0
    %401 = vmatpush1.bf16.msra.mxu0 0
    %402 = vmatprep.subr.bf16.mxu0 0
    %403 = vmatpush1.bf16.msra.mxu0 0
    %404 = vmatprep.subr.bf16.mxu0 0
    %405 = vmatpush1.bf16.msra.mxu0 0
    %406 = vmatprep.mubr.bf16.mxu0 0
    %407 = vmatmul.mubr.bf16.gmra.mrb[0].mxu0 %v358
    %v408 = vpop.f32.mrb[0].mxu0
    %v409 = vadd.f32 0.0, %v408
    %v410 = vpop.f32.mrb[0].mxu0
    %v411 = vpop.f32.mrb[0].mxu0
    %v412 = vadd.f32 0.0, %v411
    %v413 = vpop.f32.mrb[0].mxu0
    %414 = vmatprep.mubr.bf16.mxu0 0
    %415 = vmatmul.mubr.bf16.gmra.mrb[0].mxu0 %v359
    %v416 = vpop.f32.mrb[0].mxu0
    %v417 = vadd.f32 0.0, %v416
    %v418 = vpop.f32.mrb[0].mxu0
    %v419 = vpop.f32.mrb[0].mxu0
    %v420 = vadd.f32 0.0, %v419
    %v421 = vpop.f32.mrb[0].mxu0
    %422 = vmatprep.mubr.bf16.mxu0 0
    %423 = vmatmul.mubr.bf16.gmra.mrb[0].mxu0 %v360
    %v424 = vpop.f32.mrb[0].mxu0
    %v425 = vadd.f32 0.0, %v424
    %v426 = vpop.f32.mrb[0].mxu0
    %v427 = vpop.f32.mrb[0].mxu0
    %v428 = vadd.f32 0.0, %v427
    %v429 = vpop.f32.mrb[0].mxu0
    %430 = vmatprep.mubr.bf16.mxu0 0
    %431 = vmatmul.mubr.bf16.gmra.mrb[0].mxu0 %v361
    %v432 = vpop.f32.mrb[0].mxu0
    %v433 = vadd.f32 0.0, %v432
    %v434 = vpop.f32.mrb[0].mxu0
    %v435 = vpop.f32.mrb[0].mxu0
    %v436 = vadd.f32 0.0, %v435
    %v437 = vpop.f32.mrb[0].mxu0
    %438 = vmatprep.mubr.bf16.mxu0 0
    %439 = vmatmul.mubr.bf16.gmra.mrb[0].mxu0 %v362
    %v440 = vpop.f32.mrb[0].mxu0
    %v441 = vadd.f32 0.0, %v440
    %v442 = vpop.f32.mrb[0].mxu0
    %v443 = vpop.f32.mrb[0].mxu0
    %v444 = vadd.f32 0.0, %v443
    %v445 = vpop.f32.mrb[0].mxu0
    %446 = vmatprep.mubr.bf16.mxu0 0
    %447 = vmatmul.mubr.bf16.gmra.mrb[0].mxu0 %v363
    %v448 = vpop.f32.mrb[0].mxu0
    %v449 = vadd.f32 0.0, %v448
    %v450 = vpop.f32.mrb[0].mxu0
    %v451 = vpop.f32.mrb[0].mxu0
    %v452 = vadd.f32 0.0, %v451
    %v453 = vpop.f32.mrb[0].mxu0
    %454 = vmatprep.mubr.bf16.mxu0 0
    %455 = vmatmul.mubr.bf16.gmra.mrb[0].mxu0 %v364
    %v456 = vpop.f32.mrb[0].mxu0
    %v457 = vadd.f32 0.0, %v456
    %v458 = vpop.f32.mrb[0].mxu0
    %v459 = vpop.f32.mrb[0].mxu0
    %v460 = vadd.f32 0.0, %v459
    %v461 = vpop.f32.mrb[0].mxu0
    %462 = vmatprep.mubr.bf16.mxu0 0
    %463 = vmatmul.mubr.bf16.gmra.mrb[0].mxu0 %v365
    %v464 = vpop.f32.mrb[0].mxu0
    %v465 = vadd.f32 0.0, %v464
    %v466 = vpop.f32.mrb[0].mxu0
    %v467 = vpop.f32.mrb[0].mxu0
    %v468 = vadd.f32 0.0, %v467
    %v469 = vpop.f32.mrb[0].mxu0
    %470 = vdwg.mxu0
    %471 = vst [vmem:[#allocation9] sm:$0xff] %v409
    %472 = vst [vmem:[#allocation9 + $0x8] sm:$0xff] %v412
    %473 = vst [vmem:[#allocation9 + $0x10] sm:$0xff] %v417
    %474 = vst [vmem:[#allocation9 + $0x18] sm:$0xff] %v420
    %475 = vst [vmem:[#allocation9 + $0x20] sm:$0xff] %v425
    %476 = vst [vmem:[#allocation9 + $0x28] sm:$0xff] %v428
    %477 = vst [vmem:[#allocation9 + $0x30] sm:$0xff] %v433
    %478 = vst [vmem:[#allocation9 + $0x38] sm:$0xff] %v436
    %479 = vst [vmem:[#allocation9 + $0x40] sm:$0xff] %v441
    %480 = vst [vmem:[#allocation9 + $0x48] sm:$0xff] %v444
    %481 = vst [vmem:[#allocation9 + $0x50] sm:$0xff] %v449
    %482 = vst [vmem:[#allocation9 + $0x58] sm:$0xff] %v452
    %483 = vst [vmem:[#allocation9 + $0x60] sm:$0xff] %v457
    %484 = vst [vmem:[#allocation9 + $0x68] sm:$0xff] %v460
    %485 = vst [vmem:[#allocation9 + $0x70] sm:$0xff] %v465
    %486 = vst [vmem:[#allocation9 + $0x78] sm:$0xff] %v468
    %s487 = sld [smem:[#allocation2 + $0x80]]
    %v488 = vld [vmem:[#allocation8] sm:$0xff]
    %v489 = vld [vmem:[#allocation8 + $0x8] sm:$0xff]
    %v490 = vld [vmem:[#allocation8 + $0x10] sm:$0xff]
    %v491 = vld [vmem:[#allocation8 + $0x18] sm:$0xff]
    %v492 = vld [vmem:[#allocation8 + $0x20] sm:$0xff]
    %v493 = vld [vmem:[#allocation8 + $0x28] sm:$0xff]
    %v494 = vld [vmem:[#allocation8 + $0x30] sm:$0xff]
    %v495 = vld [vmem:[#allocation8 + $0x38] sm:$0xff]
    %v496 = vld [vmem:[#allocation8 + $0x40] sm:$0xff]
    %v497 = vld [vmem:[#allocation8 + $0x48] sm:$0xff]
    %v498 = vld [vmem:[#allocation8 + $0x50] sm:$0xff]
    %v499 = vld [vmem:[#allocation8 + $0x58] sm:$0xff]
    %v500 = vld [vmem:[#allocation8 + $0x60] sm:$0xff]
    %v501 = vld [vmem:[#allocation8 + $0x68] sm:$0xff]
    %v502 = vld [vmem:[#allocation8 + $0x70] sm:$0xff]
    %v503 = vld [vmem:[#allocation8 + $0x78] sm:$0xff]
    %v504 = vstv %s487
    %v505 = vmul.f32 %v504, %v488
    %v506 = vmul.f32 %v504, %v489
    %v507 = vmul.f32 %v504, %v490
    %v508 = vmul.f32 %v504, %v491
    %v509 = vmul.f32 %v504, %v492
    %v510 = vmul.f32 %v504, %v493
    %v511 = vmul.f32 %v504, %v494
    %v512 = vmul.f32 %v504, %v495
    %v513 = vmul.f32 %v504, %v496
    %v514 = vmul.f32 %v504, %v497
    %v515 = vmul.f32 %v504, %v498
    %v516 = vmul.f32 %v504, %v499
    %v517 = vmul.f32 %v504, %v500
    %v518 = vmul.f32 %v504, %v501
    %v519 = vmul.f32 %v504, %v502
    %v520 = vmul.f32 %v504, %v503
    %s521 = sld [smem:[#allocation6 + $0x80]]
    %v522 = vstv %s521
    %v523 = vmul.f32 %v522, %v488
    %v524 = vmul.f32 %v522, %v489
    %v525 = vmul.f32 %v522, %v490
    %v526 = vmul.f32 %v522, %v491
    %v527 = vmul.f32 %v522, %v492
    %v528 = vmul.f32 %v522, %v493
    %v529 = vmul.f32 %v522, %v494
    %v530 = vmul.f32 %v522, %v495
    %v531 = vmul.f32 %v522, %v496
    %v532 = vmul.f32 %v522, %v497
    %v533 = vmul.f32 %v522, %v498
    %v534 = vmul.f32 %v522, %v499
    %v535 = vmul.f32 %v522, %v500
    %v536 = vmul.f32 %v522, %v501
    %v537 = vmul.f32 %v522, %v502
    %v538 = vmul.f32 %v522, %v503
    %v539 = vld [vmem:[%s103] sm:$0xff]
    %v540 = vld [vmem:[%s103 + $0x8] sm:$0xff]
    %v541 = vld [vmem:[%s103 + $0x10] sm:$0xff]
    %v542 = vld [vmem:[%s103 + $0x18] sm:$0xff]
    %v543 = vld [vmem:[%s103 + $0x20] sm:$0xff]
    %v544 = vld [vmem:[%s103 + $0x28] sm:$0xff]
    %v545 = vld [vmem:[%s103 + $0x30] sm:$0xff]
    %v546 = vld [vmem:[%s103 + $0x38] sm:$0xff]
    %v547 = vld [vmem:[%s103 + $0x40] sm:$0xff]
    %v548 = vld [vmem:[%s103 + $0x48] sm:$0xff]
    %v549 = vld [vmem:[%s103 + $0x50] sm:$0xff]
    %v550 = vld [vmem:[%s103 + $0x58] sm:$0xff]
    %v551 = vld [vmem:[%s103 + $0x60] sm:$0xff]
    %v552 = vld [vmem:[%s103 + $0x68] sm:$0xff]
    %v553 = vld [vmem:[%s103 + $0x70] sm:$0xff]
    %v554 = vld [vmem:[%s103 + $0x78] sm:$0xff]
    %s555 = sld [smem:[#allocation2 + $0x81]]
    %v556 = vstv %s555
    %v557 = vmul.f32 %v556, %v539
    %v558 = vmul.f32 %v556, %v540
    %v559 = vmul.f32 %v556, %v541
    %v560 = vmul.f32 %v556, %v542
    %v561 = vmul.f32 %v556, %v543
    %v562 = vmul.f32 %v556, %v544
    %v563 = vmul.f32 %v556, %v545
    %v564 = vmul.f32 %v556, %v546
    %v565 = vmul.f32 %v556, %v547
    %v566 = vmul.f32 %v556, %v548
    %v567 = vmul.f32 %v556, %v549
    %v568 = vmul.f32 %v556, %v550
    %v569 = vmul.f32 %v556, %v551
    %v570 = vmul.f32 %v556, %v552
    %v571 = vmul.f32 %v556, %v553
    %v572 = vmul.f32 %v556, %v554
    %v573 = vadd.f32 %v505, %v557
    %v574 = vadd.f32 %v506, %v558
    %v575 = vadd.f32 %v507, %v559
    %v576 = vadd.f32 %v508, %v560
    %v577 = vadd.f32 %v509, %v561
    %v578 = vadd.f32 %v510, %v562
    %v579 = vadd.f32 %v511, %v563
    %v580 = vadd.f32 %v512, %v564
    %v581 = vadd.f32 %v513, %v565
    %v582 = vadd.f32 %v514, %v566
    %v583 = vadd.f32 %v515, %v567
    %v584 = vadd.f32 %v516, %v568
    %v585 = vadd.f32 %v517, %v569
    %v586 = vadd.f32 %v518, %v570
    %v587 = vadd.f32 %v519, %v571
    %v588 = vadd.f32 %v520, %v572
    %s589 = sld [smem:[#allocation6 + $0x81]]
    %v590 = vstv %s589
    %v591 = vmul.f32 %v590, %v539
    %v592 = vmul.f32 %v590, %v540
    %v593 = vmul.f32 %v590, %v541
    %v594 = vmul.f32 %v590, %v542
    %v595 = vmul.f32 %v590, %v543
    %v596 = vmul.f32 %v590, %v544
    %v597 = vmul.f32 %v590, %v545
    %v598 = vmul.f32 %v590, %v546
    %v599 = vmul.f32 %v590, %v547
    %v600 = vmul.f32 %v590, %v548
    %v601 = vmul.f32 %v590, %v549
    %v602 = vmul.f32 %v590, %v550
    %v603 = vmul.f32 %v590, %v551
    %v604 = vmul.f32 %v590, %v552
    %v605 = vmul.f32 %v590, %v553
    %v606 = vmul.f32 %v590, %v554
    %v607 = vadd.f32 %v523, %v591
    %v608 = vadd.f32 %v524, %v592
    %v609 = vadd.f32 %v525, %v593
    %v610 = vadd.f32 %v526, %v594
    %v611 = vadd.f32 %v527, %v595
    %v612 = vadd.f32 %v528, %v596
    %v613 = vadd.f32 %v529, %v597
    %v614 = vadd.f32 %v530, %v598
    %v615 = vadd.f32 %v531, %v599
    %v616 = vadd.f32 %v532, %v600
    %v617 = vadd.f32 %v533, %v601
    %v618 = vadd.f32 %v534, %v602
    %v619 = vadd.f32 %v535, %v603
    %v620 = vadd.f32 %v536, %v604
    %v621 = vadd.f32 %v537, %v605
    %v622 = vadd.f32 %v538, %v606
    %v623 = vld [vmem:[%s188] sm:$0xff]
    %v624 = vld [vmem:[%s188 + $0x8] sm:$0xff]
    %v625 = vld [vmem:[%s188 + $0x10] sm:$0xff]
    %v626 = vld [vmem:[%s188 + $0x18] sm:$0xff]
    %v627 = vld [vmem:[%s188 + $0x20] sm:$0xff]
    %v628 = vld [vmem:[%s188 + $0x28] sm:$0xff]
    %v629 = vld [vmem:[%s188 + $0x30] sm:$0xff]
    %v630 = vld [vmem:[%s188 + $0x38] sm:$0xff]
    %v631 = vld [vmem:[%s188 + $0x40] sm:$0xff]
    %v632 = vld [vmem:[%s188 + $0x48] sm:$0xff]
    %v633 = vld [vmem:[%s188 + $0x50] sm:$0xff]
    %v634 = vld [vmem:[%s188 + $0x58] sm:$0xff]
    %v635 = vld [vmem:[%s188 + $0x60] sm:$0xff]
    %v636 = vld [vmem:[%s188 + $0x68] sm:$0xff]
    %v637 = vld [vmem:[%s188 + $0x70] sm:$0xff]
    %v638 = vld [vmem:[%s188 + $0x78] sm:$0xff]
    %s639 = sld [smem:[#allocation2 + $0x82]]
    %v640 = vstv %s639
    %v641 = vmul.f32 %v640, %v623
    %v642 = vmul.f32 %v640, %v624
    %v643 = vmul.f32 %v640, %v625
    %v644 = vmul.f32 %v640, %v626
    %v645 = vmul.f32 %v640, %v627
    %v646 = vmul.f32 %v640, %v628
    %v647 = vmul.f32 %v640, %v629
    %v648 = vmul.f32 %v640, %v630
    %v649 = vmul.f32 %v640, %v631
    %v650 = vmul.f32 %v640, %v632
    %v651 = vmul.f32 %v640, %v633
    %v652 = vmul.f32 %v640, %v634
    %v653 = vmul.f32 %v640, %v635
    %v654 = vmul.f32 %v640, %v636
    %v655 = vmul.f32 %v640, %v637
    %v656 = vmul.f32 %v640, %v638
    %v657 = vadd.f32 %v573, %v641
    %v658 = vadd.f32 %v574, %v642
    %v659 = vadd.f32 %v575, %v643
    %v660 = vadd.f32 %v576, %v644
    %v661 = vadd.f32 %v577, %v645
    %v662 = vadd.f32 %v578, %v646
    %v663 = vadd.f32 %v579, %v647
    %v664 = vadd.f32 %v580, %v648
    %v665 = vadd.f32 %v581, %v649
    %v666 = vadd.f32 %v582, %v650
    %v667 = vadd.f32 %v583, %v651
    %v668 = vadd.f32 %v584, %v652
    %v669 = vadd.f32 %v585, %v653
    %v670 = vadd.f32 %v586, %v654
    %v671 = vadd.f32 %v587, %v655
    %v672 = vadd.f32 %v588, %v656
    %s673 = sld [smem:[#allocation6 + $0x82]]
    %v674 = vstv %s673
    %v675 = vmul.f32 %v674, %v623
    %v676 = vmul.f32 %v674, %v624
    %v677 = vmul.f32 %v674, %v625
    %v678 = vmul.f32 %v674, %v626
    %v679 = vmul.f32 %v674, %v627
    %v680 = vmul.f32 %v674, %v628
    %v681 = vmul.f32 %v674, %v629
    %v682 = vmul.f32 %v674, %v630
    %v683 = vmul.f32 %v674, %v631
    %v684 = vmul.f32 %v674, %v632
    %v685 = vmul.f32 %v674, %v633
    %v686 = vmul.f32 %v674, %v634
    %v687 = vmul.f32 %v674, %v635
    %v688 = vmul.f32 %v674, %v636
    %v689 = vmul.f32 %v674, %v637
    %v690 = vmul.f32 %v674, %v638
    %v691 = vadd.f32 %v607, %v675
    %v692 = vadd.f32 %v608, %v676
    %v693 = vadd.f32 %v609, %v677
    %v694 = vadd.f32 %v610, %v678
    %v695 = vadd.f32 %v611, %v679
    %v696 = vadd.f32 %v612, %v680
    %v697 = vadd.f32 %v613, %v681
    %v698 = vadd.f32 %v614, %v682
    %v699 = vadd.f32 %v615, %v683
    %v700 = vadd.f32 %v616, %v684
    %v701 = vadd.f32 %v617, %v685
    %v702 = vadd.f32 %v618, %v686
    %v703 = vadd.f32 %v619, %v687
    %v704 = vadd.f32 %v620, %v688
    %v705 = vadd.f32 %v621, %v689
    %v706 = vadd.f32 %v622, %v690
    %v707 = vld [vmem:[%s273] sm:$0xff]
    %v708 = vld [vmem:[%s273 + $0x8] sm:$0xff]
    %v709 = vld [vmem:[%s273 + $0x10] sm:$0xff]
    %v710 = vld [vmem:[%s273 + $0x18] sm:$0xff]
    %v711 = vld [vmem:[%s273 + $0x20] sm:$0xff]
    %v712 = vld [vmem:[%s273 + $0x28] sm:$0xff]
    %v713 = vld [vmem:[%s273 + $0x30] sm:$0xff]
    %v714 = vld [vmem:[%s273 + $0x38] sm:$0xff]
    %v715 = vld [vmem:[%s273 + $0x40] sm:$0xff]
    %v716 = vld [vmem:[%s273 + $0x48] sm:$0xff]
    %v717 = vld [vmem:[%s273 + $0x50] sm:$0xff]
    %v718 = vld [vmem:[%s273 + $0x58] sm:$0xff]
    %v719 = vld [vmem:[%s273 + $0x60] sm:$0xff]
    %v720 = vld [vmem:[%s273 + $0x68] sm:$0xff]
    %v721 = vld [vmem:[%s273 + $0x70] sm:$0xff]
    %v722 = vld [vmem:[%s273 + $0x78] sm:$0xff]
    %s723 = sld [smem:[#allocation2 + $0x83]]
    %v724 = vstv %s723
    %v725 = vmul.f32 %v724, %v707
    %v726 = vmul.f32 %v724, %v708
    %v727 = vmul.f32 %v724, %v709
    %v728 = vmul.f32 %v724, %v710
    %v729 = vmul.f32 %v724, %v711
    %v730 = vmul.f32 %v724, %v712
    %v731 = vmul.f32 %v724, %v713
    %v732 = vmul.f32 %v724, %v714
    %v733 = vmul.f32 %v724, %v715
    %v734 = vmul.f32 %v724, %v716
    %v735 = vmul.f32 %v724, %v717
    %v736 = vmul.f32 %v724, %v718
    %v737 = vmul.f32 %v724, %v719
    %v738 = vmul.f32 %v724, %v720
    %v739 = vmul.f32 %v724, %v721
    %v740 = vmul.f32 %v724, %v722
    %v741 = vadd.f32 %v657, %v725
    %v742 = vadd.f32 %v658, %v726
    %v743 = vadd.f32 %v659, %v727
    %v744 = vadd.f32 %v660, %v728
    %v745 = vadd.f32 %v661, %v729
    %v746 = vadd.f32 %v662, %v730
    %v747 = vadd.f32 %v663, %v731
    %v748 = vadd.f32 %v664, %v732
    %v749 = vadd.f32 %v665, %v733
    %v750 = vadd.f32 %v666, %v734
    %v751 = vadd.f32 %v667, %v735
    %v752 = vadd.f32 %v668, %v736
    %v753 = vadd.f32 %v669, %v737
    %v754 = vadd.f32 %v670, %v738
    %v755 = vadd.f32 %v671, %v739
    %v756 = vadd.f32 %v672, %v740
    %s757 = sld [smem:[#allocation6 + $0x83]]
    %v758 = vstv %s757
    %v759 = vmul.f32 %v758, %v707
    %v760 = vmul.f32 %v758, %v708
    %v761 = vmul.f32 %v758, %v709
    %v762 = vmul.f32 %v758, %v710
    %v763 = vmul.f32 %v758, %v711
    %v764 = vmul.f32 %v758, %v712
    %v765 = vmul.f32 %v758, %v713
    %v766 = vmul.f32 %v758, %v714
    %v767 = vmul.f32 %v758, %v715
    %v768 = vmul.f32 %v758, %v716
    %v769 = vmul.f32 %v758, %v717
    %v770 = vmul.f32 %v758, %v718
    %v771 = vmul.f32 %v758, %v719
    %v772 = vmul.f32 %v758, %v720
    %v773 = vmul.f32 %v758, %v721
    %v774 = vmul.f32 %v758, %v722
    %v775 = vadd.f32 %v691, %v759
    %v776 = vadd.f32 %v692, %v760
    %v777 = vadd.f32 %v693, %v761
    %v778 = vadd.f32 %v694, %v762
    %v779 = vadd.f32 %v695, %v763
    %v780 = vadd.f32 %v696, %v764
    %v781 = vadd.f32 %v697, %v765
    %v782 = vadd.f32 %v698, %v766
    %v783 = vadd.f32 %v699, %v767
    %v784 = vadd.f32 %v700, %v768
    %v785 = vadd.f32 %v701, %v769
    %v786 = vadd.f32 %v702, %v770
    %v787 = vadd.f32 %v703, %v771
    %v788 = vadd.f32 %v704, %v772
    %v789 = vadd.f32 %v705, %v773
    %v790 = vadd.f32 %v706, %v774
    %v791 = vpack.c.bf16 %v742, %v741
    %v792 = vpack.c.bf16 %v744, %v743
    %v793 = vpack.c.bf16 %v746, %v745
    %v794 = vpack.c.bf16 %v748, %v747
    %v795 = vpack.c.bf16 %v750, %v749
    %v796 = vpack.c.bf16 %v752, %v751
    %v797 = vpack.c.bf16 %v754, %v753
    %v798 = vpack.c.bf16 %v756, %v755
    %v799 = vpack.c.bf16 %v776, %v775
    %v800 = vpack.c.bf16 %v778, %v777
    %v801 = vpack.c.bf16 %v780, %v779
    %v802 = vpack.c.bf16 %v782, %v781
    %v803 = vpack.c.bf16 %v784, %v783
    %v804 = vpack.c.bf16 %v786, %v785
    %v805 = vpack.c.bf16 %v788, %v787
    %v806 = vpack.c.bf16 %v790, %v789
    %807 = vmatprep.subr.bf16.mxu0 0
    %808 = vmatpush1.bf16.msra.mxu0 %v799
    %809 = vmatprep.subr.bf16.mxu0 0
    %810 = vmatpush1.bf16.msra.mxu0 %v800
    %811 = vmatprep.subr.bf16.mxu0 0
    %812 = vmatpush1.bf16.msra.mxu0 %v801
    %813 = vmatprep.subr.bf16.mxu0 0
    %814 = vmatpush1.bf16.msra.mxu0 %v802
    %815 = vmatprep.subr.bf16.mxu0 0
    %816 = vmatpush1.bf16.msra.mxu0 %v803
    %817 = vmatprep.subr.bf16.mxu0 0
    %818 = vmatpush1.bf16.msra.mxu0 %v804
    %819 = vmatprep.subr.bf16.mxu0 0
    %820 = vmatpush1.bf16.msra.mxu0 %v805
    %821 = vmatprep.subr.bf16.mxu0 0
    %822 = vmatpush1.bf16.msra.mxu0 %v806
    %823 = vmatprep.subr.bf16.mxu0 0
    %824 = vmatpush1.bf16.msra.mxu0 0
    %825 = vmatprep.subr.bf16.mxu0 0
    %826 = vmatpush1.bf16.msra.mxu0 0
    %827 = vmatprep.subr.bf16.mxu0 0
    %828 = vmatpush1.bf16.msra.mxu0 0
    %829 = vmatprep.subr.bf16.mxu0 0
    %830 = vmatpush1.bf16.msra.mxu0 0
    %831 = vmatprep.subr.bf16.mxu0 0
    %832 = vmatpush1.bf16.msra.mxu0 0
    %833 = vmatprep.subr.bf16.mxu0 0
    %834 = vmatpush1.bf16.msra.mxu0 0
    %835 = vmatprep.subr.bf16.mxu0 0
    %836 = vmatpush1.bf16.msra.mxu0 0
    %837 = vmatprep.subr.bf16.mxu0 0
    %838 = vmatpush1.bf16.msra.mxu0 0
    %839 = vmatprep.mubr.bf16.mxu0 0
    %840 = vmatmul.mubr.bf16.gmra.mrb[0].mxu0 %v791
    %v841 = vpop.f32.mrb[0].mxu0
    %v842 = vadd.f32 0.0, %v841
    %v843 = vpop.f32.mrb[0].mxu0
    %v844 = vpop.f32.mrb[0].mxu0
    %v845 = vadd.f32 0.0, %v844
    %v846 = vpop.f32.mrb[0].mxu0
    %847 = vmatprep.mubr.bf16.mxu0 0
    %848 = vmatmul.mubr.bf16.gmra.mrb[0].mxu0 %v792
    %v849 = vpop.f32.mrb[0].mxu0
    %v850 = vadd.f32 0.0, %v849
    %v851 = vpop.f32.mrb[0].mxu0
    %v852 = vpop.f32.mrb[0].mxu0
    %v853 = vadd.f32 0.0, %v852
    %v854 = vpop.f32.mrb[0].mxu0
    %855 = vmatprep.mubr.bf16.mxu0 0
    %856 = vmatmul.mubr.bf16.gmra.mrb[0].mxu0 %v793
    %v857 = vpop.f32.mrb[0].mxu0
    %v858 = vadd.f32 0.0, %v857
    %v859 = vpop.f32.mrb[0].mxu0
    %v860 = vpop.f32.mrb[0].mxu0
    %v861 = vadd.f32 0.0, %v860
    %v862 = vpop.f32.mrb[0].mxu0
    %863 = vmatprep.mubr.bf16.mxu0 0
    %864 = vmatmul.mubr.bf16.gmra.mrb[0].mxu0 %v794
    %v865 = vpop.f32.mrb[0].mxu0
    %v866 = vadd.f32 0.0, %v865
    %v867 = vpop.f32.mrb[0].mxu0
    %v868 = vpop.f32.mrb[0].mxu0
    %v869 = vadd.f32 0.0, %v868
    %v870 = vpop.f32.mrb[0].mxu0
    %871 = vmatprep.mubr.bf16.mxu0 0
    %872 = vmatmul.mubr.bf16.gmra.mrb[0].mxu0 %v795
    %v873 = vpop.f32.mrb[0].mxu0
    %v874 = vadd.f32 0.0, %v873
    %v875 = vpop.f32.mrb[0].mxu0
    %v876 = vpop.f32.mrb[0].mxu0
    %v877 = vadd.f32 0.0, %v876
    %v878 = vpop.f32.mrb[0].mxu0
    %879 = vmatprep.mubr.bf16.mxu0 0
    %880 = vmatmul.mubr.bf16.gmra.mrb[0].mxu0 %v796
    %v881 = vpop.f32.mrb[0].mxu0
    %v882 = vadd.f32 0.0, %v881
    %v883 = vpop.f32.mrb[0].mxu0
    %v884 = vpop.f32.mrb[0].mxu0
    %v885 = vadd.f32 0.0, %v884
    %v886 = vpop.f32.mrb[0].mxu0
    %887 = vmatprep.mubr.bf16.mxu0 0
    %888 = vmatmul.mubr.bf16.gmra.mrb[0].mxu0 %v797
    %v889 = vpop.f32.mrb[0].mxu0
    %v890 = vadd.f32 0.0, %v889
    %v891 = vpop.f32.mrb[0].mxu0
    %v892 = vpop.f32.mrb[0].mxu0
    %v893 = vadd.f32 0.0, %v892
    %v894 = vpop.f32.mrb[0].mxu0
    %895 = vmatprep.mubr.bf16.mxu0 0
    %896 = vmatmul.mubr.bf16.gmra.mrb[0].mxu0 %v798
    %v897 = vpop.f32.mrb[0].mxu0
    %v898 = vadd.f32 0.0, %v897
    %v899 = vpop.f32.mrb[0].mxu0
    %v900 = vpop.f32.mrb[0].mxu0
    %v901 = vadd.f32 0.0, %v900
    %v902 = vpop.f32.mrb[0].mxu0
    %903 = vdwg.mxu0
    %s904 = scalar_lea.vmem [#allocation9], 128
    %905 = vst [vmem:[%s904] sm:$0xff] %v842
    %906 = vst [vmem:[%s904 + $0x8] sm:$0xff] %v845
    %907 = vst [vmem:[%s904 + $0x10] sm:$0xff] %v850
    %908 = vst [vmem:[%s904 + $0x18] sm:$0xff] %v853
    %909 = vst [vmem:[%s904 + $0x20] sm:$0xff] %v858
    %910 = vst [vmem:[%s904 + $0x28] sm:$0xff] %v861
    %911 = vst [vmem:[%s904 + $0x30] sm:$0xff] %v866
    %912 = vst [vmem:[%s904 + $0x38] sm:$0xff] %v869
    %913 = vst [vmem:[%s904 + $0x40] sm:$0xff] %v874
    %914 = vst [vmem:[%s904 + $0x48] sm:$0xff] %v877
    %915 = vst [vmem:[%s904 + $0x50] sm:$0xff] %v882
    %916 = vst [vmem:[%s904 + $0x58] sm:$0xff] %v885
    %917 = vst [vmem:[%s904 + $0x60] sm:$0xff] %v890
    %918 = vst [vmem:[%s904 + $0x68] sm:$0xff] %v893
    %919 = vst [vmem:[%s904 + $0x70] sm:$0xff] %v898
    %920 = vst [vmem:[%s904 + $0x78] sm:$0xff] %v901
    %s921 = sld [smem:[#allocation2 + $0x100]]
    %v922 = vld [vmem:[#allocation8] sm:$0xff]
    %v923 = vld [vmem:[#allocation8 + $0x8] sm:$0xff]
    %v924 = vld [vmem:[#allocation8 + $0x10] sm:$0xff]
    %v925 = vld [vmem:[#allocation8 + $0x18] sm:$0xff]
    %v926 = vld [vmem:[#allocation8 + $0x20] sm:$0xff]
    %v927 = vld [vmem:[#allocation8 + $0x28] sm:$0xff]
    %v928 = vld [vmem:[#allocation8 + $0x30] sm:$0xff]
    %v929 = vld [vmem:[#allocation8 + $0x38] sm:$0xff]
    %v930 = vld [vmem:[#allocation8 + $0x40] sm:$0xff]
    %v931 = vld [vmem:[#allocation8 + $0x48] sm:$0xff]
    %v932 = vld [vmem:[#allocation8 + $0x50] sm:$0xff]
    %v933 = vld [vmem:[#allocation8 + $0x58] sm:$0xff]
    %v934 = vld [vmem:[#allocation8 + $0x60] sm:$0xff]
    %v935 = vld [vmem:[#allocation8 + $0x68] sm:$0xff]
    %v936 = vld [vmem:[#allocation8 + $0x70] sm:$0xff]
    %v937 = vld [vmem:[#allocation8 + $0x78] sm:$0xff]
    %v938 = vstv %s921
    %v939 = vmul.f32 %v938, %v922
    %v940 = vmul.f32 %v938, %v923
    %v941 = vmul.f32 %v938, %v924
    %v942 = vmul.f32 %v938, %v925
    %v943 = vmul.f32 %v938, %v926
    %v944 = vmul.f32 %v938, %v927
    %v945 = vmul.f32 %v938, %v928
    %v946 = vmul.f32 %v938, %v929
    %v947 = vmul.f32 %v938, %v930
    %v948 = vmul.f32 %v938, %v931
    %v949 = vmul.f32 %v938, %v932
    %v950 = vmul.f32 %v938, %v933
    %v951 = vmul.f32 %v938, %v934
    %v952 = vmul.f32 %v938, %v935
    %v953 = vmul.f32 %v938, %v936
    %v954 = vmul.f32 %v938, %v937
    %s955 = sld [smem:[#allocation6 + $0x100]]
    %v956 = vstv %s955
    %v957 = vmul.f32 %v956, %v922
    %v958 = vmul.f32 %v956, %v923
    %v959 = vmul.f32 %v956, %v924
    %v960 = vmul.f32 %v956, %v925
    %v961 = vmul.f32 %v956, %v926
    %v962 = vmul.f32 %v956, %v927
    %v963 = vmul.f32 %v956, %v928
    %v964 = vmul.f32 %v956, %v929
    %v965 = vmul.f32 %v956, %v930
    %v966 = vmul.f32 %v956, %v931
    %v967 = vmul.f32 %v956, %v932
    %v968 = vmul.f32 %v956, %v933
    %v969 = vmul.f32 %v956, %v934
    %v970 = vmul.f32 %v956, %v935
    %v971 = vmul.f32 %v956, %v936
    %v972 = vmul.f32 %v956, %v937
    %v973 = vld [vmem:[%s103] sm:$0xff]
    %v974 = vld [vmem:[%s103 + $0x8] sm:$0xff]
    %v975 = vld [vmem:[%s103 + $0x10] sm:$0xff]
    %v976 = vld [vmem:[%s103 + $0x18] sm:$0xff]
    %v977 = vld [vmem:[%s103 + $0x20] sm:$0xff]
    %v978 = vld [vmem:[%s103 + $0x28] sm:$0xff]
    %v979 = vld [vmem:[%s103 + $0x30] sm:$0xff]
    %v980 = vld [vmem:[%s103 + $0x38] sm:$0xff]
    %v981 = vld [vmem:[%s103 + $0x40] sm:$0xff]
    %v982 = vld [vmem:[%s103 + $0x48] sm:$0xff]
    %v983 = vld [vmem:[%s103 + $0x50] sm:$0xff]
    %v984 = vld [vmem:[%s103 + $0x58] sm:$0xff]
    %v985 = vld [vmem:[%s103 + $0x60] sm:$0xff]
    %v986 = vld [vmem:[%s103 + $0x68] sm:$0xff]
    %v987 = vld [vmem:[%s103 + $0x70] sm:$0xff]
    %v988 = vld [vmem:[%s103 + $0x78] sm:$0xff]
    %s989 = sld [smem:[#allocation2 + $0x101]]
    %v990 = vstv %s989
    %v991 = vmul.f32 %v990, %v973
    %v992 = vmul.f32 %v990, %v974
    %v993 = vmul.f32 %v990, %v975
    %v994 = vmul.f32 %v990, %v976
    %v995 = vmul.f32 %v990, %v977
    %v996 = vmul.f32 %v990, %v978
    %v997 = vmul.f32 %v990, %v979
    %v998 = vmul.f32 %v990, %v980
    %v999 = vmul.f32 %v990, %v981
    %v1000 = vmul.f32 %v990, %v982
    %v1001 = vmul.f32 %v990, %v983
    %v1002 = vmul.f32 %v990, %v984
    %v1003 = vmul.f32 %v990, %v985
    %v1004 = vmul.f32 %v990, %v986
    %v1005 = vmul.f32 %v990, %v987
    %v1006 = vmul.f32 %v990, %v988
    %v1007 = vadd.f32 %v939, %v991
    %v1008 = vadd.f32 %v940, %v992
    %v1009 = vadd.f32 %v941, %v993
    %v1010 = vadd.f32 %v942, %v994
    %v1011 = vadd.f32 %v943, %v995
    %v1012 = vadd.f32 %v944, %v996
    %v1013 = vadd.f32 %v945, %v997
    %v1014 = vadd.f32 %v946, %v998
    %v1015 = vadd.f32 %v947, %v999
    %v1016 = vadd.f32 %v948, %v1000
    %v1017 = vadd.f32 %v949, %v1001
    %v1018 = vadd.f32 %v950, %v1002
    %v1019 = vadd.f32 %v951, %v1003
    %v1020 = vadd.f32 %v952, %v1004
    %v1021 = vadd.f32 %v953, %v1005
    %v1022 = vadd.f32 %v954, %v1006
    %s1023 = sld [smem:[#allocation6 + $0x101]]
    %v1024 = vstv %s1023
    %v1025 = vmul.f32 %v1024, %v973
    %v1026 = vmul.f32 %v1024, %v974
    %v1027 = vmul.f32 %v1024, %v975
    %v1028 = vmul.f32 %v1024, %v976
    %v1029 = vmul.f32 %v1024, %v977
    %v1030 = vmul.f32 %v1024, %v978
    %v1031 = vmul.f32 %v1024, %v979
    %v1032 = vmul.f32 %v1024, %v980
    %v1033 = vmul.f32 %v1024, %v981
    %v1034 = vmul.f32 %v1024, %v982
    %v1035 = vmul.f32 %v1024, %v983
    %v1036 = vmul.f32 %v1024, %v984
    %v1037 = vmul.f32 %v1024, %v985
    %v1038 = vmul.f32 %v1024, %v986
    %v1039 = vmul.f32 %v1024, %v987
    %v1040 = vmul.f32 %v1024, %v988
    %v1041 = vadd.f32 %v957, %v1025
    %v1042 = vadd.f32 %v958, %v1026
    %v1043 = vadd.f32 %v959, %v1027
    %v1044 = vadd.f32 %v960, %v1028
    %v1045 = vadd.f32 %v961, %v1029
    %v1046 = vadd.f32 %v962, %v1030
    %v1047 = vadd.f32 %v963, %v1031
    %v1048 = vadd.f32 %v964, %v1032
    %v1049 = vadd.f32 %v965, %v1033
    %v1050 = vadd.f32 %v966, %v1034
    %v1051 = vadd.f32 %v967, %v1035
    %v1052 = vadd.f32 %v968, %v1036
    %v1053 = vadd.f32 %v969, %v1037
    %v1054 = vadd.f32 %v970, %v1038
    %v1055 = vadd.f32 %v971, %v1039
    %v1056 = vadd.f32 %v972, %v1040
    %v1057 = vld [vmem:[%s188] sm:$0xff]
    %v1058 = vld [vmem:[%s188 + $0x8] sm:$0xff]
    %v1059 = vld [vmem:[%s188 + $0x10] sm:$0xff]
    %v1060 = vld [vmem:[%s188 + $0x18] sm:$0xff]
    %v1061 = vld [vmem:[%s188 + $0x20] sm:$0xff]
    %v1062 = vld [vmem:[%s188 + $0x28] sm:$0xff]
    %v1063 = vld [vmem:[%s188 + $0x30] sm:$0xff]
    %v1064 = vld [vmem:[%s188 + $0x38] sm:$0xff]
    %v1065 = vld [vmem:[%s188 + $0x40] sm:$0xff]
    %v1066 = vld [vmem:[%s188 + $0x48] sm:$0xff]
    %v1067 = vld [vmem:[%s188 + $0x50] sm:$0xff]
    %v1068 = vld [vmem:[%s188 + $0x58] sm:$0xff]
    %v1069 = vld [vmem:[%s188 + $0x60] sm:$0xff]
    %v1070 = vld [vmem:[%s188 + $0x68] sm:$0xff]
    %v1071 = vld [vmem:[%s188 + $0x70] sm:$0xff]
    %v1072 = vld [vmem:[%s188 + $0x78] sm:$0xff]
    %s1073 = sld [smem:[#allocation2 + $0x102]]
    %v1074 = vstv %s1073
    %v1075 = vmul.f32 %v1074, %v1057
    %v1076 = vmul.f32 %v1074, %v1058
    %v1077 = vmul.f32 %v1074, %v1059
    %v1078 = vmul.f32 %v1074, %v1060
    %v1079 = vmul.f32 %v1074, %v1061
    %v1080 = vmul.f32 %v1074, %v1062
    %v1081 = vmul.f32 %v1074, %v1063
    %v1082 = vmul.f32 %v1074, %v1064
    %v1083 = vmul.f32 %v1074, %v1065
    %v1084 = vmul.f32 %v1074, %v1066
    %v1085 = vmul.f32 %v1074, %v1067
    %v1086 = vmul.f32 %v1074, %v1068
    %v1087 = vmul.f32 %v1074, %v1069
    %v1088 = vmul.f32 %v1074, %v1070
    %v1089 = vmul.f32 %v1074, %v1071
    %v1090 = vmul.f32 %v1074, %v1072
    %v1091 = vadd.f32 %v1007, %v1075
    %v1092 = vadd.f32 %v1008, %v1076
    %v1093 = vadd.f32 %v1009, %v1077
    %v1094 = vadd.f32 %v1010, %v1078
    %v1095 = vadd.f32 %v1011, %v1079
    %v1096 = vadd.f32 %v1012, %v1080
    %v1097 = vadd.f32 %v1013, %v1081
    %v1098 = vadd.f32 %v1014, %v1082
    %v1099 = vadd.f32 %v1015, %v1083
    %v1100 = vadd.f32 %v1016, %v1084
    %v1101 = vadd.f32 %v1017, %v1085
    %v1102 = vadd.f32 %v1018, %v1086
    %v1103 = vadd.f32 %v1019, %v1087
    %v1104 = vadd.f32 %v1020, %v1088
    %v1105 = vadd.f32 %v1021, %v1089
    %v1106 = vadd.f32 %v1022, %v1090
    %s1107 = sld [smem:[#allocation6 + $0x102]]
    %v1108 = vstv %s1107
    %v1109 = vmul.f32 %v1108, %v1057
    %v1110 = vmul.f32 %v1108, %v1058
    %v1111 = vmul.f32 %v1108, %v1059
    %v1112 = vmul.f32 %v1108, %v1060
    %v1113 = vmul.f32 %v1108, %v1061
    %v1114 = vmul.f32 %v1108, %v1062
    %v1115 = vmul.f32 %v1108, %v1063
    %v1116 = vmul.f32 %v1108, %v1064
    %v1117 = vmul.f32 %v1108, %v1065
    %v1118 = vmul.f32 %v1108, %v1066
    %v1119 = vmul.f32 %v1108, %v1067
    %v1120 = vmul.f32 %v1108, %v1068
    %v1121 = vmul.f32 %v1108, %v1069
    %v1122 = vmul.f32 %v1108, %v1070
    %v1123 = vmul.f32 %v1108, %v1071
    %v1124 = vmul.f32 %v1108, %v1072
    %v1125 = vadd.f32 %v1041, %v1109
    %v1126 = vadd.f32 %v1042, %v1110
    %v1127 = vadd.f32 %v1043, %v1111
    %v1128 = vadd.f32 %v1044, %v1112
    %v1129 = vadd.f32 %v1045, %v1113
    %v1130 = vadd.f32 %v1046, %v1114
    %v1131 = vadd.f32 %v1047, %v1115
    %v1132 = vadd.f32 %v1048, %v1116
    %v1133 = vadd.f32 %v1049, %v1117
    %v1134 = vadd.f32 %v1050, %v1118
    %v1135 = vadd.f32 %v1051, %v1119
    %v1136 = vadd.f32 %v1052, %v1120
    %v1137 = vadd.f32 %v1053, %v1121
    %v1138 = vadd.f32 %v1054, %v1122
    %v1139 = vadd.f32 %v1055, %v1123
    %v1140 = vadd.f32 %v1056, %v1124
    %v1141 = vld [vmem:[%s273] sm:$0xff]
    %v1142 = vld [vmem:[%s273 + $0x8] sm:$0xff]
    %v1143 = vld [vmem:[%s273 + $0x10] sm:$0xff]
    %v1144 = vld [vmem:[%s273 + $0x18] sm:$0xff]
    %v1145 = vld [vmem:[%s273 + $0x20] sm:$0xff]
    %v1146 = vld [vmem:[%s273 + $0x28] sm:$0xff]
    %v1147 = vld [vmem:[%s273 + $0x30] sm:$0xff]
    %v1148 = vld [vmem:[%s273 + $0x38] sm:$0xff]
    %v1149 = vld [vmem:[%s273 + $0x40] sm:$0xff]
    %v1150 = vld [vmem:[%s273 + $0x48] sm:$0xff]
    %v1151 = vld [vmem:[%s273 + $0x50] sm:$0xff]
    %v1152 = vld [vmem:[%s273 + $0x58] sm:$0xff]
    %v1153 = vld [vmem:[%s273 + $0x60] sm:$0xff]
    %v1154 = vld [vmem:[%s273 + $0x68] sm:$0xff]
    %v1155 = vld [vmem:[%s273 + $0x70] sm:$0xff]
    %v1156 = vld [vmem:[%s273 + $0x78] sm:$0xff]
    %s1157 = sld [smem:[#allocation2 + $0x103]]
    %v1158 = vstv %s1157
    %v1159 = vmul.f32 %v1158, %v1141
    %v1160 = vmul.f32 %v1158, %v1142
    %v1161 = vmul.f32 %v1158, %v1143
    %v1162 = vmul.f32 %v1158, %v1144
    %v1163 = vmul.f32 %v1158, %v1145
    %v1164 = vmul.f32 %v1158, %v1146
    %v1165 = vmul.f32 %v1158, %v1147
    %v1166 = vmul.f32 %v1158, %v1148
    %v1167 = vmul.f32 %v1158, %v1149
    %v1168 = vmul.f32 %v1158, %v1150
    %v1169 = vmul.f32 %v1158, %v1151
    %v1170 = vmul.f32 %v1158, %v1152
    %v1171 = vmul.f32 %v1158, %v1153
    %v1172 = vmul.f32 %v1158, %v1154
    %v1173 = vmul.f32 %v1158, %v1155
    %v1174 = vmul.f32 %v1158, %v1156
    %v1175 = vadd.f32 %v1091, %v1159
    %v1176 = vadd.f32 %v1092, %v1160
    %v1177 = vadd.f32 %v1093, %v1161
    %v1178 = vadd.f32 %v1094, %v1162
    %v1179 = vadd.f32 %v1095, %v1163
    %v1180 = vadd.f32 %v1096, %v1164
    %v1181 = vadd.f32 %v1097, %v1165
    %v1182 = vadd.f32 %v1098, %v1166
    %v1183 = vadd.f32 %v1099, %v1167
    %v1184 = vadd.f32 %v1100, %v1168
    %v1185 = vadd.f32 %v1101, %v1169
    %v1186 = vadd.f32 %v1102, %v1170
    %v1187 = vadd.f32 %v1103, %v1171
    %v1188 = vadd.f32 %v1104, %v1172
    %v1189 = vadd.f32 %v1105, %v1173
    %v1190 = vadd.f32 %v1106, %v1174
    %s1191 = sld [smem:[#allocation6 + $0x103]]
    %v1192 = vstv %s1191
    %v1193 = vmul.f32 %v1192, %v1141
    %v1194 = vmul.f32 %v1192, %v1142
    %v1195 = vmul.f32 %v1192, %v1143
    %v1196 = vmul.f32 %v1192, %v1144
    %v1197 = vmul.f32 %v1192, %v1145
    %v1198 = vmul.f32 %v1192, %v1146
    %v1199 = vmul.f32 %v1192, %v1147
    %v1200 = vmul.f32 %v1192, %v1148
    %v1201 = vmul.f32 %v1192, %v1149
    %v1202 = vmul.f32 %v1192, %v1150
    %v1203 = vmul.f32 %v1192, %v1151
    %v1204 = vmul.f32 %v1192, %v1152
    %v1205 = vmul.f32 %v1192, %v1153
    %v1206 = vmul.f32 %v1192, %v1154
    %v1207 = vmul.f32 %v1192, %v1155
    %v1208 = vmul.f32 %v1192, %v1156
    %v1209 = vadd.f32 %v1125, %v1193
    %v1210 = vadd.f32 %v1126, %v1194
    %v1211 = vadd.f32 %v1127, %v1195
    %v1212 = vadd.f32 %v1128, %v1196
    %v1213 = vadd.f32 %v1129, %v1197
    %v1214 = vadd.f32 %v1130, %v1198
    %v1215 = vadd.f32 %v1131, %v1199
    %v1216 = vadd.f32 %v1132, %v1200
    %v1217 = vadd.f32 %v1133, %v1201
    %v1218 = vadd.f32 %v1134, %v1202
    %v1219 = vadd.f32 %v1135, %v1203
    %v1220 = vadd.f32 %v1136, %v1204
    %v1221 = vadd.f32 %v1137, %v1205
    %v1222 = vadd.f32 %v1138, %v1206
    %v1223 = vadd.f32 %v1139, %v1207
    %v1224 = vadd.f32 %v1140, %v1208
    %v1225 = vpack.c.bf16 %v1176, %v1175
    %v1226 = vpack.c.bf16 %v1178, %v1177
    %v1227 = vpack.c.bf16 %v1180, %v1179
    %v1228 = vpack.c.bf16 %v1182, %v1181
    %v1229 = vpack.c.bf16 %v1184, %v1183
    %v1230 = vpack.c.bf16 %v1186, %v1185
    %v1231 = vpack.c.bf16 %v1188, %v1187
    %v1232 = vpack.c.bf16 %v1190, %v1189
    %v1233 = vpack.c.bf16 %v1210, %v1209
    %v1234 = vpack.c.bf16 %v1212, %v1211
    %v1235 = vpack.c.bf16 %v1214, %v1213
    %v1236 = vpack.c.bf16 %v1216, %v1215
    %v1237 = vpack.c.bf16 %v1218, %v1217
    %v1238 = vpack.c.bf16 %v1220, %v1219
    %v1239 = vpack.c.bf16 %v1222, %v1221
    %v1240 = vpack.c.bf16 %v1224, %v1223
    %1241 = vmatprep.subr.bf16.mxu0 0
    %1242 = vmatpush1.bf16.msra.mxu0 %v1233
    %1243 = vmatprep.subr.bf16.mxu0 0
    %1244 = vmatpush1.bf16.msra.mxu0 %v1234
    %1245 = vmatprep.subr.bf16.mxu0 0
    %1246 = vmatpush1.bf16.msra.mxu0 %v1235
    %1247 = vmatprep.subr.bf16.mxu0 0
    %1248 = vmatpush1.bf16.msra.mxu0 %v1236
    %1249 = vmatprep.subr.bf16.mxu0 0
    %1250 = vmatpush1.bf16.msra.mxu0 %v1237
    %1251 = vmatprep.subr.bf16.mxu0 0
    %1252 = vmatpush1.bf16.msra.mxu0 %v1238
    %1253 = vmatprep.subr.bf16.mxu0 0
    %1254 = vmatpush1.bf16.msra.mxu0 %v1239
    %1255 = vmatprep.subr.bf16.mxu0 0
    %1256 = vmatpush1.bf16.msra.mxu0 %v1240
    %1257 = vmatprep.subr.bf16.mxu0 0
    %1258 = vmatpush1.bf16.msra.mxu0 0
    %1259 = vmatprep.subr.bf16.mxu0 0
    %1260 = vmatpush1.bf16.msra.mxu0 0
    %1261 = vmatprep.subr.bf16.mxu0 0
    %1262 = vmatpush1.bf16.msra.mxu0 0
    %1263 = vmatprep.subr.bf16.mxu0 0
    %1264 = vmatpush1.bf16.msra.mxu0 0
    %1265 = vmatprep.subr.bf16.mxu0 0
    %1266 = vmatpush1.bf16.msra.mxu0 0
    %1267 = vmatprep.subr.bf16.mxu0 0
    %1268 = vmatpush1.bf16.msra.mxu0 0
    %1269 = vmatprep.subr.bf16.mxu0 0
    %1270 = vmatpush1.bf16.msra.mxu0 0
    %1271 = vmatprep.subr.bf16.mxu0 0
    %1272 = vmatpush1.bf16.msra.mxu0 0
    %1273 = vmatprep.mubr.bf16.mxu0 0
    %1274 = vmatmul.mubr.bf16.gmra.mrb[0].mxu0 %v1225
    %v1275 = vpop.f32.mrb[0].mxu0
    %v1276 = vadd.f32 0.0, %v1275
    %v1277 = vpop.f32.mrb[0].mxu0
    %v1278 = vpop.f32.mrb[0].mxu0
    %v1279 = vadd.f32 0.0, %v1278
    %v1280 = vpop.f32.mrb[0].mxu0
    %1281 = vmatprep.mubr.bf16.mxu0 0
    %1282 = vmatmul.mubr.bf16.gmra.mrb[0].mxu0 %v1226
    %v1283 = vpop.f32.mrb[0].mxu0
    %v1284 = vadd.f32 0.0, %v1283
    %v1285 = vpop.f32.mrb[0].mxu0
    %v1286 = vpop.f32.mrb[0].mxu0
    %v1287 = vadd.f32 0.0, %v1286
    %v1288 = vpop.f32.mrb[0].mxu0
    %1289 = vmatprep.mubr.bf16.mxu0 0
    %1290 = vmatmul.mubr.bf16.gmra.mrb[0].mxu0 %v1227
    %v1291 = vpop.f32.mrb[0].mxu0
    %v1292 = vadd.f32 0.0, %v1291
    %v1293 = vpop.f32.mrb[0].mxu0
    %v1294 = vpop.f32.mrb[0].mxu0
    %v1295 = vadd.f32 0.0, %v1294
    %v1296 = vpop.f32.mrb[0].mxu0
    %1297 = vmatprep.mubr.bf16.mxu0 0
    %1298 = vmatmul.mubr.bf16.gmra.mrb[0].mxu0 %v1228
    %v1299 = vpop.f32.mrb[0].mxu0
    %v1300 = vadd.f32 0.0, %v1299
    %v1301 = vpop.f32.mrb[0].mxu0
    %v1302 = vpop.f32.mrb[0].mxu0
    %v1303 = vadd.f32 0.0, %v1302
    %v1304 = vpop.f32.mrb[0].mxu0
    %1305 = vmatprep.mubr.bf16.mxu0 0
    %1306 = vmatmul.mubr.bf16.gmra.mrb[0].mxu0 %v1229
    %v1307 = vpop.f32.mrb[0].mxu0
    %v1308 = vadd.f32 0.0, %v1307
    %v1309 = vpop.f32.mrb[0].mxu0
    %v1310 = vpop.f32.mrb[0].mxu0
    %v1311 = vadd.f32 0.0, %v1310
    %v1312 = vpop.f32.mrb[0].mxu0
    %1313 = vmatprep.mubr.bf16.mxu0 0
    %1314 = vmatmul.mubr.bf16.gmra.mrb[0].mxu0 %v1230
    %v1315 = vpop.f32.mrb[0].mxu0
    %v1316 = vadd.f32 0.0, %v1315
    %v1317 = vpop.f32.mrb[0].mxu0
    %v1318 = vpop.f32.mrb[0].mxu0
    %v1319 = vadd.f32 0.0, %v1318
    %v1320 = vpop.f32.mrb[0].mxu0
    %1321 = vmatprep.mubr.bf16.mxu0 0
    %1322 = vmatmul.mubr.bf16.gmra.mrb[0].mxu0 %v1231
    %v1323 = vpop.f32.mrb[0].mxu0
    %v1324 = vadd.f32 0.0, %v1323
    %v1325 = vpop.f32.mrb[0].mxu0
    %v1326 = vpop.f32.mrb[0].mxu0
    %v1327 = vadd.f32 0.0, %v1326
    %v1328 = vpop.f32.mrb[0].mxu0
    %1329 = vmatprep.mubr.bf16.mxu0 0
    %1330 = vmatmul.mubr.bf16.gmra.mrb[0].mxu0 %v1232
    %v1331 = vpop.f32.mrb[0].mxu0
    %v1332 = vadd.f32 0.0, %v1331
    %v1333 = vpop.f32.mrb[0].mxu0
    %v1334 = vpop.f32.mrb[0].mxu0
    %v1335 = vadd.f32 0.0, %v1334
    %v1336 = vpop.f32.mrb[0].mxu0
    %1337 = vdwg.mxu0
    %s1338 = scalar_lea.vmem [#allocation9], 256
    %1339 = vst [vmem:[%s1338] sm:$0xff] %v1276
    %1340 = vst [vmem:[%s1338 + $0x8] sm:$0xff] %v1279
    %1341 = vst [vmem:[%s1338 + $0x10] sm:$0xff] %v1284
    %1342 = vst [vmem:[%s1338 + $0x18] sm:$0xff] %v1287
    %1343 = vst [vmem:[%s1338 + $0x20] sm:$0xff] %v1292
    %1344 = vst [vmem:[%s1338 + $0x28] sm:$0xff] %v1295
    %1345 = vst [vmem:[%s1338 + $0x30] sm:$0xff] %v1300
    %1346 = vst [vmem:[%s1338 + $0x38] sm:$0xff] %v1303
    %1347 = vst [vmem:[%s1338 + $0x40] sm:$0xff] %v1308
    %1348 = vst [vmem:[%s1338 + $0x48] sm:$0xff] %v1311
    %1349 = vst [vmem:[%s1338 + $0x50] sm:$0xff] %v1316
    %1350 = vst [vmem:[%s1338 + $0x58] sm:$0xff] %v1319
    %1351 = vst [vmem:[%s1338 + $0x60] sm:$0xff] %v1324
    %1352 = vst [vmem:[%s1338 + $0x68] sm:$0xff] %v1327
    %1353 = vst [vmem:[%s1338 + $0x70] sm:$0xff] %v1332
    %1354 = vst [vmem:[%s1338 + $0x78] sm:$0xff] %v1335
    // Predicated region
    $region26: #{tpu_custom_call.1} parent=1 // pred_check
      _
    $region27: #{tpu_custom_call.1} parent=1 // pred_check_branch
      %1356 = sbr.rel (0) target = $region29
    $region28: #{tpu_custom_call.1} parent=1 // pred_region
      %s1358 = ssub.s32 6144, 6144
      %1359 = vsyncadd [#allocation4], %s1358
      %s1360 = sshll.u32 [#allocation9], 4
      %s1361 = int_to_ptr.vmem [resolvable:$true] %s1360
      %1366 = dma.vmem_to_hbm [thread:$0]  %s1361, 6144, %s3, [#allocation4], 128, 128, 8
    $region29: #{tpu_custom_call.1} parent=1 // pred_fallthru
      _
    // Predicated region
    $region30: #{tpu_custom_call.1} parent=1 // pred_check
      _
    $region31: #{tpu_custom_call.1} parent=1 // pred_check_branch
      %1368 = sbr.rel (0) target = $region33
    $region32: #{tpu_custom_call.1} parent=1 // pred_region
      %1369 = dma.done [#allocation4], 6144
    $region33: #{tpu_custom_call.1} parent=1 // pred_fallthru
      _
    %1370 = vsyncpa [#allocation3], 1
    %1371 = vsyncpa [#allocation4], 1
    %1372 = vsyncpa [#allocation5], 1
    %1373 = vsyncpa [#allocation7], 1

</llo_original>
